<compile_context>
chip_gen: v6e
topology: v6e:2x2x1
jax: 0.10.0
libtpu: 0.0.40
codegen_flags: <defaults>
</compile_context>

<pallas_src>
import functools
import math

import jax
import jax.numpy as jnp
from jax.experimental import pallas as pl
from jax.experimental.pallas import tpu as pltpu


# ----------------------------- in-kernel math helpers -----------------------------
def _gelu(v, exact):
    if exact:
        # matches PyTorch nn.GELU() (erf-based, non-approximate)
        return 0.5 * v * (1.0 + jax.lax.erf(v * (1.0 / math.sqrt(2.0))))
    # tanh approximation routes the transcendental to the EUP slot on the fast path
    cc = math.sqrt(2.0 / math.pi)
    return 0.5 * v * (1.0 + jnp.tanh(cc * (v + 0.044715 * v * v * v)))


def _layernorm(v, w, b, eps=1e-5):
    mu = jnp.mean(v, axis=-1, keepdims=True)
    var = jnp.mean((v - mu) ** 2, axis=-1, keepdims=True)
    return (v - mu) * jax.lax.rsqrt(var + eps) * w + b


# ----------------------------------- the kernel -----------------------------------
def adaln_kernel(
    x_ref, mod_ref,
    ln1w_ref, ln1b_ref, ln2w_ref, ln2b_ref,
    wqkv_ref, bqkv_ref,
    w1_ref, b1_ref, w2_ref, b2_ref,
    o_ref,
    *, compute_dtype, kv_chunk,
):
    f32 = jnp.float32
    cd = jnp.dtype(compute_dtype)
    exact = cd == jnp.dtype(jnp.float32)

    x = x_ref[...].astype(f32)                       # (TB, S, D)
    TB, S, D = x.shape

    mod = mod_ref[...].astype(f32)                   # (TB, 6, D): a1,g1,b1,a2,g2,b2
    alpha1, gamma1, beta1 = mod[:, 0:1, :], mod[:, 1:2, :], mod[:, 2:3, :]
    alpha2, gamma2, beta2 = mod[:, 3:4, :], mod[:, 4:5, :], mod[:, 5:6, :]

    # ---- attention branch: x + alpha1 * Attn(modulate(LN1(x), beta1, gamma1)) ----
    h = _layernorm(x, ln1w_ref[...], ln1b_ref[...])
    h = h * (1.0 + gamma1) + beta1                   # (TB, S, D)

    qkv = (jnp.dot(h.reshape(TB * S, D).astype(cd), wqkv_ref[...],
                   preferred_element_type=f32) + bqkv_ref[...]).reshape(TB, S, 3 * D)
    # fold 1/sqrt(D) into q (touches S*D elements instead of S*S later)
    q = (qkv[..., 0 * D:1 * D] * (1.0 / math.sqrt(D))).astype(cd)
    k = qkv[..., 1 * D:2 * D].astype(cd)
    v = qkv[..., 2 * D:3 * D].astype(cd)

    batched_qk = (((2,), (2,)), ((0,), (0,)))        # (TB,S,D)x(TB,CK,D) -> (TB,S,CK)
    batched_pv = (((2,), (1,)), ((0,), (0,)))        # (TB,S,CK)x(TB,CK,D) -> (TB,S,D)

    if kv_chunk is None or kv_chunk >= S:
        s = jax.lax.dot_general(q, k, batched_qk, preferred_element_type=f32)
        m = jnp.max(s, axis=-1, keepdims=True)
        p = jnp.exp(s - m)
        denom = jnp.sum(p, axis=-1, keepdims=True)
        attn = jax.lax.dot_general(p.astype(cd), v, batched_pv,
                                   preferred_element_type=f32)
        # deferred softmax normalization: O(S*D) VPU work instead of O(S*S)
        attn = attn * pl.reciprocal(denom, approx=not exact)
    else:
        # flash-style online softmax over K/V chunks (scores never fully resident)
        m_run = jnp.full((TB, S, 1), -jnp.inf, f32)
        l_run = jnp.zeros((TB, S, 1), f32)
        acc = jnp.zeros((TB, S, D), f32)
        for ci in range(S // kv_chunk):
            kc = k[:, ci * kv_chunk:(ci + 1) * kv_chunk, :]
            vc = v[:, ci * kv_chunk:(ci + 1) * kv_chunk, :]
            s = jax.lax.dot_general(q, kc, batched_qk, preferred_element_type=f32)
            m_new = jnp.maximum(m_run, jnp.max(s, axis=-1, keepdims=True))
            scale = jnp.exp(m_run - m_new)
            p = jnp.exp(s - m_new)
            l_run = scale * l_run + jnp.sum(p, axis=-1, keepdims=True)
            acc = scale * acc + jax.lax.dot_general(
                p.astype(cd), vc, batched_pv, preferred_element_type=f32)
            m_run = m_new
        attn = acc * pl.reciprocal(l_run, approx=not exact)

    x1 = x + alpha1 * attn

    # ---- feed-forward branch: x1 + alpha2 * FF(modulate(LN2(x1), beta2, gamma2)) ----
    h2 = _layernorm(x1, ln2w_ref[...], ln2b_ref[...])
    h2 = h2 * (1.0 + gamma2) + beta2

    f = jnp.dot(h2.reshape(TB * S, D).astype(cd), w1_ref[...],
                preferred_element_type=f32) + b1_ref[...]
    f = _gelu(f, exact)
    f = jnp.dot(f.astype(cd), w2_ref[...], preferred_element_type=f32) + b2_ref[...]
    f = _gelu(f, exact)                              # second GELU matches the PyTorch module
    f = f.reshape(TB, S, D)

    o_ref[...] = (x1 + alpha2 * f).astype(o_ref.dtype)


# ------------------------- one-time prepared weights ------------------------------
def prepare_weights(params, compute_dtype=jnp.bfloat16):
    """Fuse / transpose / cast the weights once.  Call this OUTSIDE the hot loop and
    pass the result as `prepared=` so no per-call weight rebuilding happens."""
    cd = jnp.dtype(compute_dtype)
    f32 = jnp.float32
    return {
        "wcT": params["wc"].T.astype(f32),                           # (2D, 6D)
        "bc": params["bc"].astype(f32),
        "wqkv": jnp.concatenate(
            [params["wq"].T, params["wk"].T, params["wv"].T], axis=1).astype(cd),
        "bqkv": jnp.concatenate(
            [params["bq"], params["bk"], params["bv"]])[None, :].astype(f32),
        "w1": params["w1"].T.astype(cd), "b1": params["b1"][None, :].astype(f32),
        "w2": params["w2"].T.astype(cd), "b2": params["b2"][None, :].astype(f32),
        "ln1w": params["ln1w"][None, :].astype(f32),
        "ln1b": params["ln1b"][None, :].astype(f32),
        "ln2w": params["ln2w"][None, :].astype(f32),
        "ln2b": params["ln2b"][None, :].astype(f32),
    }


# --------------------------- capability / hw configuration ------------------------
def _probe_kernel(w_ref, o_ref):
    o_ref[...] = w_ref[...]


@functools.lru_cache(maxsize=None)
def _single_buffer_supported():
    """One-time check that pipeline_mode=pl.Buffered(1) on a constant-index block
    lowers and runs.  Executes a tiny concrete pallas_call on its own data, so it is
    safe to call during a user jit trace and never touches tracers."""
    try:
        spec = pl.BlockSpec((8, 128), lambda i: (0, 0), pipeline_mode=pl.Buffered(1))
        f = pl.pallas_call(
            _probe_kernel,
            out_shape=jax.ShapeDtypeStruct((8, 128), jnp.float32),
            grid_spec=pltpu.PrefetchScalarGridSpec(
                num_scalar_prefetch=0, grid=(2,),
                in_specs=[spec],
                out_specs=pl.BlockSpec((8, 128), lambda i: (0, 0))),
        )
        jax.block_until_ready(f(jnp.zeros((8, 128), jnp.float32)))
        return True
    except Exception:
        return False


@functools.lru_cache(maxsize=None)
def _tpu_config():
    """(vmem_capacity_bytes, mxu_m_target, two_tensorcores) with safe fallbacks."""
    vmem_cap = 64 << 20                       # conservative default (v7x per-core)
    try:
        info = pltpu.get_tpu_info()
        vmem_cap = int(getattr(info, "vmem_capacity_bytes", vmem_cap))
    except Exception:
        pass
    m_target, two_cores = 256, False          # v6e/v7x MXUs are 256 wide
    try:
        kind = jax.devices()[0].device_kind.lower()
        if "v5 lite" in kind or "v5lite" in kind or "v5e" in kind:
            m_target = 128                    # v5e MXU is 128x128
        if "7" in kind:
            two_cores = True                  # v7x: 2 TCs share the parallel grid axis
    except Exception:
        pass
    return vmem_cap, m_target, two_cores


# ------------------------------- sizing heuristics ---------------------------------
def _block_act_bytes(tb, S, D, kv_chunk, x_itemsize, cd_itemsize):
    """Conservative (liveness-free) per-block VMEM estimate for in-kernel values."""
    ck = S if kv_chunk is None else min(kv_chunk, S)
    # f32   : x, h/h2, qkv(3D), attn/acc, x1, ff-hidden(4D), ff-out  -> ~13*D words/row
    # cdtype: h2d, q, k, v, ff-hidden, p copies                      -> ~10*D /row
    # scores: f32 scores + exp(scores) + cdtype copy                 -> (8+isz)*ck /row
    per_row = 4 * 13 * D + cd_itemsize * 10 * D + (8 + cd_itemsize) * ck
    block = tb * S * per_row + tb * 6 * D * 4
    # double-buffered pipeline copies of the streamed x / out / mod blocks
    io = 2 * (2 * tb * S * D * x_itemsize + tb * 6 * D * 4)
    return block + io


def _pick_tb(B, S, fits, m_target, prefer_even_steps):
    divisors = [d for d in range(1, B + 1) if B % d == 0]
    fitting = [d for d in divisors if fits(d)] or [1]
    tb = fitting[-1]                          # largest block that fits the VMEM budget
    if B >= 2 and tb == B:
        # keep >= 2 grid steps (DMA/compute overlap, megacore work) as long as the
        # flattened matmul M dim still meets the MXU fill target
        smaller = ([d for d in fitting if d < B and d * S >= m_target]
                   or [d for d in fitting if d < B])
        if smaller:
            tb = smaller[-1]
    if prefer_even_steps and B >= 2:
        even = [d for d in fitting if d <= tb and (B // d) % 2 == 0]
        if even:
            tb = even[-1]                     # balance the two v7x TensorCores
    return tb


def _auto_kv_chunk(S):
    if S <= 1024:
        return None                           # full (TB,S,S) scores still fits comfortably
    for ck in (512, 256, 128):
        if S % ck == 0:
            return ck
    return None  # TODO(synk): pad/mask S not a multiple of 128 instead of full fallback


# ----------------------------------- the wrapper -----------------------------------
def adaln_block(x, t, c, params=None, compute_dtype=jnp.bfloat16, *,
                prepared=None, kv_chunk="auto"):
    """AdaLnBlock forward.  Pass `prepared=prepare_weights(params, dtype)` (computed
    once) to avoid rebuilding fused weights every call.  x may be f32 or bf16; the
    output dtype follows x (bf16 I/O halves the streamed bytes; LN/softmax/residual
    math is f32 in-kernel either way)."""
    B, S, D = x.shape
    f32 = jnp.float32
    if prepared is None:
        prepared = prepare_weights(params, compute_dtype)
    cd = jnp.dtype(prepared["wqkv"].dtype)

    # Conditioning projection hoisted out of the kernel: one (B,2D)x(2D,6D) XLA matmul
    # instead of a per-grid-step M=1 matmul (wc never enters VMEM).
    cond = jnp.concatenate([t, c], axis=-1).astype(f32)               # (B, 2D)
    mod = (cond @ prepared["wcT"] + prepared["bc"]).reshape(B, 6, D)  # (B, 6, D)

    if kv_chunk == "auto":
        kv_chunk = _auto_kv_chunk(S)
    if kv_chunk is not None and (kv_chunk >= S or S % kv_chunk != 0):
        kv_chunk = None

    weights = (prepared["ln1w"], prepared["ln1b"], prepared["ln2w"], prepared["ln2b"],
               prepared["wqkv"], prepared["bqkv"],
               prepared["w1"], prepared["b1"], prepared["w2"], prepared["b2"])

    single_buffer = _single_buffer_supported()
    weight_bytes = sum(int(w.size) * w.dtype.itemsize for w in weights)
    weight_vmem = weight_bytes * (1 if single_buffer else 2)

    vmem_cap, m_target, two_cores = _tpu_config()
    budget = int(vmem_cap * 0.85)             # headroom for compiler scratch

    x_isz, cd_isz = x.dtype.itemsize, cd.itemsize
    fits = lambda tb: (weight_vmem +
                       _block_act_bytes(tb, S, D, kv_chunk, x_isz, cd_isz)) <= budget
    tb = _pick_tb(B, S, fits, m_target, two_cores)
    grid = (B // tb,)

    est = weight_vmem + _block_act_bytes(tb, S, D, kv_chunk, x_isz, cd_isz) + (8 << 20)
    vmem_limit = int(min(max(est, 32 << 20), budget))

    def _const_spec(shape):
        idx = lambda b, _n=len(shape): (0,) * _n
        if single_buffer:
            return pl.BlockSpec(shape, idx, pipeline_mode=pl.Buffered(1))
        return pl.BlockSpec(shape, idx)

    in_specs = [
        pl.BlockSpec((tb, S, D), lambda b: (b, 0, 0)),
        pl.BlockSpec((tb, 6, D), lambda b: (b, 0, 0)),
    ] + [_const_spec(w.shape) for w in weights]

    return pl.pallas_call(
        functools.partial(adaln_kernel, compute_dtype=cd, kv_chunk=kv_chunk),
        out_shape=jax.ShapeDtypeStruct((B, S, D), x.dtype),
        grid_spec=pltpu.PrefetchScalarGridSpec(
            num_scalar_prefetch=0,
            grid=grid,
            in_specs=in_specs,
            out_specs=pl.BlockSpec((tb, S, D), lambda b: (b, 0, 0)),
        ),
        compiler_params=pltpu.CompilerParams(
            dimension_semantics=("parallel",),
            vmem_limit_bytes=vmem_limit,
        ),
    )(x, mod, *weights)


# ---------------- pure-JAX reference (for correctness check) ----------------
def adaln_ref(x, t, c, p):
    D = x.shape[-1]
    cond = jnp.concatenate([t, c], axis=-1) @ p["wc"].T + p["bc"]
    cond = cond[:, None, :]
    a1, g1, be1, a2, g2, be2 = jnp.split(cond, 6, axis=-1)

    def ln(v, w, b, eps=1e-5):
        mu = v.mean(-1, keepdims=True)
        var = ((v - mu) ** 2).mean(-1, keepdims=True)
        return (v - mu) * jax.lax.rsqrt(var + eps) * w + b

    h = ln(x, p["ln1w"], p["ln1b"]) * (1 + g1) + be1
    Q = h @ p["wq"].T + p["bq"]
    K = h @ p["wk"].T + p["bk"]
    V = h @ p["wv"].T + p["bv"]
    att = jax.nn.softmax(jnp.einsum("bqd,bkd->bqk", Q, K) / math.sqrt(D), axis=-1)
    att = att @ V
    x1 = x + a1 * att

    h2 = ln(x1, p["ln2w"], p["ln2b"]) * (1 + g2) + be2
    f = jax.nn.gelu(h2 @ p["w1"].T + p["b1"], approximate=False)
    f = jax.nn.gelu(f @ p["w2"].T + p["b2"], approximate=False)
    return x1 + a2 * f


def init_params(key, dim):
    ks = jax.random.split(key, 12)
    n = lambda k, shape, s=0.05: (jax.random.normal(k, shape, jnp.float32) * s)
    return {
        "wc": n(ks[0], (6 * dim, 2 * dim)), "bc": n(ks[1], (6 * dim,)),
        "wq": n(ks[2], (dim, dim)), "bq": n(ks[3], (dim,)),
        "wk": n(ks[4], (dim, dim)), "bk": n(ks[5], (dim,)),
        "wv": n(ks[6], (dim, dim)), "bv": n(ks[7], (dim,)),
        "w1": n(ks[8], (4 * dim, dim)), "b1": n(ks[9], (4 * dim,)),
        "w2": n(ks[10], (dim, 4 * dim)), "b2": n(ks[11], (dim,)),
        "ln1w": jnp.ones((dim,), jnp.float32), "ln1b": jnp.zeros((dim,), jnp.float32),
        "ln2w": jnp.ones((dim,), jnp.float32), "ln2b": jnp.zeros((dim,), jnp.float32),
    }


if __name__ == "__main__":
    # NOTE: D=32 is a toy width (last-dim < 128 -> masked stores / lane relayouts);
    # production DiT widths should keep D a multiple of 128.
    B, S, D = 2, 8, 32
    key = jax.random.PRNGKey(0)
    kx, kt, kc, kp = jax.random.split(key, 4)
    x = jax.random.normal(kx, (B, S, D), jnp.float32)
    t = jax.random.normal(kt, (B, D), jnp.float32)
    c = jax.random.normal(kc, (B, D), jnp.float32)
    params = init_params(kp, D)

    ref = jax.block_until_ready(adaln_ref(x, t, c, params))

    # exact-semantics path (f32 matmuls, erf GELU, exact reciprocal) -> tight tolerance
    prep_f32 = prepare_weights(params, jnp.float32)
    out_f32 = jax.block_until_ready(adaln_block(x, t, c, prepared=prep_f32))
    assert out_f32.shape == (B, S, D) and out_f32.dtype == x.dtype
    assert jnp.allclose(out_f32, ref, rtol=1e-4, atol=1e-4), (
        f"f32 path: max abs diff = {jnp.max(jnp.abs(out_f32 - ref))}")

    # exact path with flash-style KV-chunked attention forced on (validates that path)
    out_chunk = jax.block_until_ready(
        adaln_block(x, t, c, prepared=prep_f32, kv_chunk=4))
    assert jnp.allclose(out_chunk, ref, rtol=1e-4, atol=1e-4), (
        f"chunked path: max abs diff = {jnp.max(jnp.abs(out_chunk - ref))}")

    # fast path (bf16 MXU operands, f32 accumulation, approx reciprocal / tanh GELU)
    prep_bf16 = prepare_weights(params, jnp.bfloat16)
    out_bf16 = jax.block_until_ready(adaln_block(x, t, c, prepared=prep_bf16))
    assert jnp.allclose(out_bf16, ref, rtol=2e-2, atol=2e-2), (
        f"bf16 path: max abs diff = {jnp.max(jnp.abs(out_bf16 - ref))}")

    # bf16 I/O at the pallas_call boundary (halves streamed x / out bytes)
    out_io = jax.block_until_ready(
        adaln_block(x.astype(jnp.bfloat16), t, c, prepared=prep_bf16))
    assert out_io.dtype == jnp.bfloat16
    assert jnp.allclose(out_io.astype(jnp.float32), ref, rtol=4e-2, atol=4e-2), (
        f"bf16-io path: max abs diff = {jnp.max(jnp.abs(out_io.astype(jnp.float32) - ref))}")

    print("KERNEL_OK")
</pallas_src>

<mosaic_0001>
module attributes {stable_mosaic.version = 11 : i64} {
  func.func @_probe_kernel(%arg0: i32, %arg1: memref<8x128xf32, #tpu.memory_space<vmem>>, %arg2: memref<8x128xf32, #tpu.memory_space<vmem>>) attributes {dimension_semantics = [#tpu.dimension_semantics<arbitrary>], iteration_bounds = array<i64: 2>, scalar_prefetch = 0 : i64, scratch_operands = 0 : i64, tpu.core_type = #tpu.core_type<tc>, window_params = [{pipeline_mode = #tpu.pipeline_mode<synchronous>, transform_indices = @transform_0, window_bounds = array<i64: 8, 128>}, {pipeline_mode = #tpu.pipeline_mode<synchronous>, transform_indices = @transform_1, window_bounds = array<i64: 8, 128>}]} {
    %c0 = arith.constant 0 : index
    %c0_0 = arith.constant 0 : index
    %0 = vector.load %arg1[%c0, %c0_0] : memref<8x128xf32, #tpu.memory_space<vmem>>, vector<8x128xf32>
    %c0_1 = arith.constant 0 : index
    %c0_2 = arith.constant 0 : index
    %1 = vector.load %arg2[%c0_1, %c0_2] : memref<8x128xf32, #tpu.memory_space<vmem>>, vector<8x128xf32>
    tpu.vector_store %arg2[%c0_1, %c0_2], %0 {strides = array<i32>} : memref<8x128xf32, #tpu.memory_space<vmem>>, vector<8x128xf32>,
    return
  }
  func.func @transform_0(%arg0: i32) -> (i32, i32) {
    %c0_i32 = arith.constant 0 : i32
    %c0_i32_0 = arith.constant 0 : i32
    %c0_i32_1 = arith.constant 0 : i32
    return %c0_i32, %c0_i32_0 : i32, i32
  }
  func.func @transform_1(%arg0: i32) -> (i32, i32) {
    %c0_i32 = arith.constant 0 : i32
    %c0_i32_0 = arith.constant 0 : i32
    %c0_i32_1 = arith.constant 0 : i32
    return %c0_i32, %c0_i32_0 : i32, i32
  }
}

module attributes {stable_mosaic.version = 11 : i64} {
  func.func @adaln_kernel(%arg0: i32, %arg1: memref<1x8x32xf32, #tpu.memory_space<vmem>>, %arg2: memref<1x6x32xf32, #tpu.memory_space<vmem>>, %arg3: memref<1x32xf32, #tpu.memory_space<vmem>>, %arg4: memref<1x32xf32, #tpu.memory_space<vmem>>, %arg5: memref<1x32xf32, #tpu.memory_space<vmem>>, %arg6: memref<1x32xf32, #tpu.memory_space<vmem>>, %arg7: memref<32x96xf32, #tpu.memory_space<vmem>>, %arg8: memref<1x96xf32, #tpu.memory_space<vmem>>, %arg9: memref<32x128xf32, #tpu.memory_space<vmem>>, %arg10: memref<1x128xf32, #tpu.memory_space<vmem>>, %arg11: memref<128x32xf32, #tpu.memory_space<vmem>>, %arg12: memref<1x32xf32, #tpu.memory_space<vmem>>, %arg13: memref<1x8x32xf32, #tpu.memory_space<vmem>>) attributes {dimension_semantics = [#tpu.dimension_semantics<parallel>], iteration_bounds = array<i64: 2>, scalar_prefetch = 0 : i64, scratch_operands = 0 : i64, tpu.core_type = #tpu.core_type<tc>, window_params = [{transform_indices = @transform_0, window_bounds = array<i64: 1, 8, 32>}, {transform_indices = @transform_1, window_bounds = array<i64: 1, 6, 32>}, {pipeline_mode = #tpu.pipeline_mode<synchronous>, transform_indices = @transform_2, window_bounds = array<i64: 1, 32>}, {pipeline_mode = #tpu.pipeline_mode<synchronous>, transform_indices = @transform_3, window_bounds = array<i64: 1, 32>}, {pipeline_mode = #tpu.pipeline_mode<synchronous>, transform_indices = @transform_4, window_bounds = array<i64: 1, 32>}, {pipeline_mode = #tpu.pipeline_mode<synchronous>, transform_indices = @transform_5, window_bounds = array<i64: 1, 32>}, {pipeline_mode = #tpu.pipeline_mode<synchronous>, transform_indices = @transform_6, window_bounds = array<i64: 32, 96>}, {pipeline_mode = #tpu.pipeline_mode<synchronous>, transform_indices = @transform_7, window_bounds = array<i64: 1, 96>}, {pipeline_mode = #tpu.pipeline_mode<synchronous>, transform_indices = @transform_8, window_bounds = array<i64: 32, 128>}, {pipeline_mode = #tpu.pipeline_mode<synchronous>, transform_indices = @transform_9, window_bounds = array<i64: 1, 128>}, {pipeline_mode = #tpu.pipeline_mode<synchronous>, transform_indices = @transform_10, window_bounds = array<i64: 128, 32>}, {pipeline_mode = #tpu.pipeline_mode<synchronous>, transform_indices = @transform_11, window_bounds = array<i64: 1, 32>}, {transform_indices = @transform_12, window_bounds = array<i64: 1, 8, 32>}]} {
    %c0 = arith.constant 0 : index
    %c0_0 = arith.constant 0 : index
    %c0_1 = arith.constant 0 : index
    %0 = vector.load %arg1[%c0, %c0_0, %c0_1] : memref<1x8x32xf32, #tpu.memory_space<vmem>>, vector<1x8x32xf32>
    %c0_2 = arith.constant 0 : index
    %c0_3 = arith.constant 0 : index
    %c0_4 = arith.constant 0 : index
    %1 = vector.load %arg2[%c0_2, %c0_3, %c0_4] : memref<1x6x32xf32, #tpu.memory_space<vmem>>, vector<1x6x32xf32>
    %2 = vector.extract_strided_slice %1 {offsets = [0, 0, 0], sizes = [1, 1, 32], strides = [1, 1, 1]} : vector<1x6x32xf32> to vector<1x1x32xf32>
    %3 = vector.extract_strided_slice %1 {offsets = [0, 1, 0], sizes = [1, 1, 32], strides = [1, 1, 1]} : vector<1x6x32xf32> to vector<1x1x32xf32>
    %4 = vector.extract_strided_slice %1 {offsets = [0, 2, 0], sizes = [1, 1, 32], strides = [1, 1, 1]} : vector<1x6x32xf32> to vector<1x1x32xf32>
    %5 = vector.extract_strided_slice %1 {offsets = [0, 3, 0], sizes = [1, 1, 32], strides = [1, 1, 1]} : vector<1x6x32xf32> to vector<1x1x32xf32>
    %6 = vector.extract_strided_slice %1 {offsets = [0, 4, 0], sizes = [1, 1, 32], strides = [1, 1, 1]} : vector<1x6x32xf32> to vector<1x1x32xf32>
    %7 = vector.extract_strided_slice %1 {offsets = [0, 5, 0], sizes = [1, 1, 32], strides = [1, 1, 1]} : vector<1x6x32xf32> to vector<1x1x32xf32>
    %c0_5 = arith.constant 0 : index
    %c0_6 = arith.constant 0 : index
    %8 = vector.load %arg3[%c0_5, %c0_6] : memref<1x32xf32, #tpu.memory_space<vmem>>, vector<1x32xf32>
    %c0_7 = arith.constant 0 : index
    %c0_8 = arith.constant 0 : index
    %9 = vector.load %arg4[%c0_7, %c0_8] : memref<1x32xf32, #tpu.memory_space<vmem>>, vector<1x32xf32>
    %cst = arith.constant dense<0.000000e+00> : vector<1x8xf32>
    %10 = vector.multi_reduction <add>, %0, %cst [2] : vector<1x8x32xf32> to vector<1x8xf32>
    %11 = vector.shape_cast %10 : vector<1x8xf32> to vector<1x8x1xf32>
    %cst_9 = arith.constant 3.200000e+01 : f32
    %12 = vector.broadcast %cst_9 : f32 to vector<1x8x1xf32>
    %13 = arith.divf %11, %12 : vector<1x8x1xf32>
    %14 = vector.broadcast %13 : vector<1x8x1xf32> to vector<1x8x32xf32>
    %15 = arith.subf %0, %14 : vector<1x8x32xf32>
    %16 = arith.mulf %15, %15 : vector<1x8x32xf32>
    %cst_10 = arith.constant dense<0.000000e+00> : vector<1x8xf32>
    %17 = vector.multi_reduction <add>, %16, %cst_10 [2] : vector<1x8x32xf32> to vector<1x8xf32>
    %18 = vector.shape_cast %17 : vector<1x8xf32> to vector<1x8x1xf32>
    %cst_11 = arith.constant 3.200000e+01 : f32
    %19 = vector.broadcast %cst_11 : f32 to vector<1x8x1xf32>
    %20 = arith.divf %18, %19 : vector<1x8x1xf32>
    %21 = vector.broadcast %13 : vector<1x8x1xf32> to vector<1x8x32xf32>
    %22 = arith.subf %0, %21 : vector<1x8x32xf32>
    %cst_12 = arith.constant 9.99999974E-6 : f32
    %23 = vector.broadcast %cst_12 : f32 to vector<1x8x1xf32>
    %24 = arith.addf %20, %23 : vector<1x8x1xf32>
    %25 = math.rsqrt %24 : vector<1x8x1xf32>
    %26 = vector.broadcast %25 : vector<1x8x1xf32> to vector<1x8x32xf32>
    %27 = arith.mulf %22, %26 : vector<1x8x32xf32>
    %28 = vector.shape_cast %8 : vector<1x32xf32> to vector<1x1x32xf32>
    %29 = vector.broadcast %28 : vector<1x1x32xf32> to vector<1x8x32xf32>
    %30 = arith.mulf %27, %29 : vector<1x8x32xf32>
    %31 = vector.shape_cast %9 : vector<1x32xf32> to vector<1x1x32xf32>
    %32 = vector.broadcast %31 : vector<1x1x32xf32> to vector<1x8x32xf32>
    %33 = arith.addf %30, %32 : vector<1x8x32xf32>
    %cst_13 = arith.constant 1.000000e+00 : f32
    %34 = vector.broadcast %cst_13 : f32 to vector<1x1x32xf32>
    %35 = arith.addf %34, %3 : vector<1x1x32xf32>
    %36 = vector.broadcast %35 : vector<1x1x32xf32> to vector<1x8x32xf32>
    %37 = arith.mulf %33, %36 : vector<1x8x32xf32>
    %38 = vector.broadcast %4 : vector<1x1x32xf32> to vector<1x8x32xf32>
    %39 = arith.addf %37, %38 : vector<1x8x32xf32>
    %40 = vector.shape_cast %39 : vector<1x8x32xf32> to vector<8x32xf32>
    %c0_14 = arith.constant 0 : index
    %c0_15 = arith.constant 0 : index
    %41 = vector.load %arg7[%c0_14, %c0_15] : memref<32x96xf32, #tpu.memory_space<vmem>>, vector<32x96xf32>
    %cst_16 = arith.constant dense<0.000000e+00> : vector<8x96xf32>
    %42 = tpu.matmul %40, %41, %cst_16 {dimension_numbers = #tpu.dot_dimension_numbers<[1], [0], [0], [1], [0, 0, 1, 1], [], []>} : vector<8x32xf32>, vector<32x96xf32>, vector<8x96xf32> -> vector<8x96xf32>
    %c0_17 = arith.constant 0 : index
    %c0_18 = arith.constant 0 : index
    %43 = vector.load %arg8[%c0_17, %c0_18] : memref<1x96xf32, #tpu.memory_space<vmem>>, vector<1x96xf32>
    %44 = vector.broadcast %43 : vector<1x96xf32> to vector<8x96xf32>
    %45 = arith.addf %42, %44 : vector<8x96xf32>
    %46 = vector.shape_cast %45 : vector<8x96xf32> to vector<1x8x96xf32>
    %47 = vector.extract_strided_slice %46 {offsets = [0, 0, 0], sizes = [1, 8, 32], strides = [1, 1, 1]} : vector<1x8x96xf32> to vector<1x8x32xf32>
    %cst_19 = arith.constant 0.176776692 : f32
    %48 = vector.broadcast %cst_19 : f32 to vector<1x8x32xf32>
    %49 = arith.mulf %47, %48 : vector<1x8x32xf32>
    %50 = vector.extract_strided_slice %46 {offsets = [0, 0, 32], sizes = [1, 8, 32], strides = [1, 1, 1]} : vector<1x8x96xf32> to vector<1x8x32xf32>
    %51 = vector.extract_strided_slice %46 {offsets = [0, 0, 64], sizes = [1, 8, 32], strides = [1, 1, 1]} : vector<1x8x96xf32> to vector<1x8x32xf32>
    %cst_20 = arith.constant dense<0.000000e+00> : vector<1x8x8xf32>
    %52 = tpu.matmul %49, %50, %cst_20 {dimension_numbers = #tpu.dot_dimension_numbers<[2], [2], [1], [1], [0, 0, 0, 1, 1, 1], [0], [0]>} : vector<1x8x32xf32>, vector<1x8x32xf32>, vector<1x8x8xf32> -> vector<1x8x8xf32>
    %cst_21 = arith.constant dense<0xFF800000> : vector<1x8xf32>
    %53 = vector.multi_reduction <maximumf>, %52, %cst_21 [2] : vector<1x8x8xf32> to vector<1x8xf32>
    %54 = vector.shape_cast %53 : vector<1x8xf32> to vector<1x8x1xf32>
    %55 = vector.broadcast %54 : vector<1x8x1xf32> to vector<1x8x8xf32>
    %56 = arith.subf %52, %55 : vector<1x8x8xf32>
    %57 = math.exp %56 : vector<1x8x8xf32>
    %cst_22 = arith.constant dense<0.000000e+00> : vector<1x8xf32>
    %58 = vector.multi_reduction <add>, %57, %cst_22 [2] : vector<1x8x8xf32> to vector<1x8xf32>
    %59 = vector.shape_cast %58 : vector<1x8xf32> to vector<1x8x1xf32>
    %cst_23 = arith.constant dense<0.000000e+00> : vector<1x8x32xf32>
    %60 = tpu.matmul %57, %51, %cst_23 {dimension_numbers = #tpu.dot_dimension_numbers<[2], [1], [1], [2], [0, 0, 0, 1, 1, 2], [0], [0]>} : vector<1x8x8xf32>, vector<1x8x32xf32>, vector<1x8x32xf32> -> vector<1x8x32xf32>
    %61 = tpu.reciprocal %59 : vector<1x8x1xf32> -> vector<1x8x1xf32>
    %62 = vector.broadcast %61 : vector<1x8x1xf32> to vector<1x8x32xf32>
    %63 = arith.mulf %60, %62 : vector<1x8x32xf32>
    %64 = vector.broadcast %2 : vector<1x1x32xf32> to vector<1x8x32xf32>
    %65 = arith.mulf %64, %63 : vector<1x8x32xf32>
    %66 = arith.addf %0, %65 : vector<1x8x32xf32>
    %c0_24 = arith.constant 0 : index
    %c0_25 = arith.constant 0 : index
    %67 = vector.load %arg5[%c0_24, %c0_25] : memref<1x32xf32, #tpu.memory_space<vmem>>, vector<1x32xf32>
    %c0_26 = arith.constant 0 : index
    %c0_27 = arith.constant 0 : index
    %68 = vector.load %arg6[%c0_26, %c0_27] : memref<1x32xf32, #tpu.memory_space<vmem>>, vector<1x32xf32>
    %cst_28 = arith.constant dense<0.000000e+00> : vector<1x8xf32>
    %69 = vector.multi_reduction <add>, %66, %cst_28 [2] : vector<1x8x32xf32> to vector<1x8xf32>
    %70 = vector.shape_cast %69 : vector<1x8xf32> to vector<1x8x1xf32>
    %cst_29 = arith.constant 3.200000e+01 : f32
    %71 = vector.broadcast %cst_29 : f32 to vector<1x8x1xf32>
    %72 = arith.divf %70, %71 : vector<1x8x1xf32>
    %73 = vector.broadcast %72 : vector<1x8x1xf32> to vector<1x8x32xf32>
    %74 = arith.subf %66, %73 : vector<1x8x32xf32>
    %75 = arith.mulf %74, %74 : vector<1x8x32xf32>
    %cst_30 = arith.constant dense<0.000000e+00> : vector<1x8xf32>
    %76 = vector.multi_reduction <add>, %75, %cst_30 [2] : vector<1x8x32xf32> to vector<1x8xf32>
    %77 = vector.shape_cast %76 : vector<1x8xf32> to vector<1x8x1xf32>
    %cst_31 = arith.constant 3.200000e+01 : f32
    %78 = vector.broadcast %cst_31 : f32 to vector<1x8x1xf32>
    %79 = arith.divf %77, %78 : vector<1x8x1xf32>
    %80 = vector.broadcast %72 : vector<1x8x1xf32> to vector<1x8x32xf32>
    %81 = arith.subf %66, %80 : vector<1x8x32xf32>
    %cst_32 = arith.constant 9.99999974E-6 : f32
    %82 = vector.broadcast %cst_32 : f32 to vector<1x8x1xf32>
    %83 = arith.addf %79, %82 : vector<1x8x1xf32>
    %84 = math.rsqrt %83 : vector<1x8x1xf32>
    %85 = vector.broadcast %84 : vector<1x8x1xf32> to vector<1x8x32xf32>
    %86 = arith.mulf %81, %85 : vector<1x8x32xf32>
    %87 = vector.shape_cast %67 : vector<1x32xf32> to vector<1x1x32xf32>
    %88 = vector.broadcast %87 : vector<1x1x32xf32> to vector<1x8x32xf32>
    %89 = arith.mulf %86, %88 : vector<1x8x32xf32>
    %90 = vector.shape_cast %68 : vector<1x32xf32> to vector<1x1x32xf32>
    %91 = vector.broadcast %90 : vector<1x1x32xf32> to vector<1x8x32xf32>
    %92 = arith.addf %89, %91 : vector<1x8x32xf32>
    %cst_33 = arith.constant 1.000000e+00 : f32
    %93 = vector.broadcast %cst_33 : f32 to vector<1x1x32xf32>
    %94 = arith.addf %93, %6 : vector<1x1x32xf32>
    %95 = vector.broadcast %94 : vector<1x1x32xf32> to vector<1x8x32xf32>
    %96 = arith.mulf %92, %95 : vector<1x8x32xf32>
    %97 = vector.broadcast %7 : vector<1x1x32xf32> to vector<1x8x32xf32>
    %98 = arith.addf %96, %97 : vector<1x8x32xf32>
    %99 = vector.shape_cast %98 : vector<1x8x32xf32> to vector<8x32xf32>
    %c0_34 = arith.constant 0 : index
    %c0_35 = arith.constant 0 : index
    %100 = vector.load %arg9[%c0_34, %c0_35] : memref<32x128xf32, #tpu.memory_space<vmem>>, vector<32x128xf32>
    %cst_36 = arith.constant dense<0.000000e+00> : vector<8x128xf32>
    %101 = tpu.matmul %99, %100, %cst_36 {dimension_numbers = #tpu.dot_dimension_numbers<[1], [0], [0], [1], [0, 0, 1, 1], [], []>} : vector<8x32xf32>, vector<32x128xf32>, vector<8x128xf32> -> vector<8x128xf32>
    %c0_37 = arith.constant 0 : index
    %c0_38 = arith.constant 0 : index
    %102 = vector.load %arg10[%c0_37, %c0_38] : memref<1x128xf32, #tpu.memory_space<vmem>>, vector<1x128xf32>
    %103 = vector.broadcast %102 : vector<1x128xf32> to vector<8x128xf32>
    %104 = arith.addf %101, %103 : vector<8x128xf32>
    %cst_39 = arith.constant 5.000000e-01 : f32
    %105 = vector.broadcast %cst_39 : f32 to vector<8x128xf32>
    %106 = arith.mulf %105, %104 : vector<8x128xf32>
    %cst_40 = arith.constant 0.707106769 : f32
    %107 = vector.broadcast %cst_40 : f32 to vector<8x128xf32>
    %108 = arith.mulf %104, %107 : vector<8x128xf32>
    %109 = math.erf %108 : vector<8x128xf32>
    %cst_41 = arith.constant 1.000000e+00 : f32
    %110 = vector.broadcast %cst_41 : f32 to vector<8x128xf32>
    %111 = arith.addf %110, %109 : vector<8x128xf32>
    %112 = arith.mulf %106, %111 : vector<8x128xf32>
    %c0_42 = arith.constant 0 : index
    %c0_43 = arith.constant 0 : index
    %113 = vector.load %arg11[%c0_42, %c0_43] : memref<128x32xf32, #tpu.memory_space<vmem>>, vector<128x32xf32>
    %cst_44 = arith.constant dense<0.000000e+00> : vector<8x32xf32>
    %114 = tpu.matmul %112, %113, %cst_44 {dimension_numbers = #tpu.dot_dimension_numbers<[1], [0], [0], [1], [0, 0, 1, 1], [], []>} : vector<8x128xf32>, vector<128x32xf32>, vector<8x32xf32> -> vector<8x32xf32>
    %c0_45 = arith.constant 0 : index
    %c0_46 = arith.constant 0 : index
    %115 = vector.load %arg12[%c0_45, %c0_46] : memref<1x32xf32, #tpu.memory_space<vmem>>, vector<1x32xf32>
    %116 = vector.broadcast %115 : vector<1x32xf32> to vector<8x32xf32>
    %117 = arith.addf %114, %116 : vector<8x32xf32>
    %cst_47 = arith.constant 5.000000e-01 : f32
    %118 = vector.broadcast %cst_47 : f32 to vector<8x32xf32>
    %119 = arith.mulf %118, %117 : vector<8x32xf32>
    %cst_48 = arith.constant 0.707106769 : f32
    %120 = vector.broadcast %cst_48 : f32 to vector<8x32xf32>
    %121 = arith.mulf %117, %120 : vector<8x32xf32>
    %122 = math.erf %121 : vector<8x32xf32>
    %cst_49 = arith.constant 1.000000e+00 : f32
    %123 = vector.broadcast %cst_49 : f32 to vector<8x32xf32>
    %124 = arith.addf %123, %122 : vector<8x32xf32>
    %125 = arith.mulf %119, %124 : vector<8x32xf32>
    %126 = vector.shape_cast %125 : vector<8x32xf32> to vector<1x8x32xf32>
    %127 = vector.broadcast %5 : vector<1x1x32xf32> to vector<1x8x32xf32>
    %128 = arith.mulf %127, %126 : vector<1x8x32xf32>
    %129 = arith.addf %66, %128 : vector<1x8x32xf32>
    %c0_50 = arith.constant 0 : index
    %c0_51 = arith.constant 0 : index
    %c0_52 = arith.constant 0 : index
    %130 = vector.load %arg13[%c0_50, %c0_51, %c0_52] : memref<1x8x32xf32, #tpu.memory_space<vmem>>, vector<1x8x32xf32>
    tpu.vector_store %arg13[%c0_50, %c0_51, %c0_52], %129 {strides = array<i32>} : memref<1x8x32xf32, #tpu.memory_space<vmem>>, vector<1x8x32xf32>,
    return
  }
  func.func @transform_0(%arg0: i32) -> (i32, i32, i32) {
    %c0_i32 = arith.constant 0 : i32
    %c0_i32_0 = arith.constant 0 : i32
    %c0_i32_1 = arith.constant 0 : i32
    return %arg0, %c0_i32, %c0_i32_0 : i32, i32, i32
  }
  func.func @transform_1(%arg0: i32) -> (i32, i32, i32) {
    %c0_i32 = arith.constant 0 : i32
    %c0_i32_0 = arith.constant 0 : i32
    %c0_i32_1 = arith.constant 0 : i32
    return %arg0, %c0_i32, %c0_i32_0 : i32, i32, i32
  }
  func.func @transform_2(%arg0: i32) -> (i32, i32) {
    %c0_i32 = arith.constant 0 : i32
    %c0_i32_0 = arith.constant 0 : i32
    %c0_i32_1 = arith.constant 0 : i32
    return %c0_i32, %c0_i32_0 : i32, i32
  }
  func.func @transform_3(%arg0: i32) -> (i32, i32) {
    %c0_i32 = arith.constant 0 : i32
    %c0_i32_0 = arith.constant 0 : i32
    %c0_i32_1 = arith.constant 0 : i32
    return %c0_i32, %c0_i32_0 : i32, i32
  }
  func.func @transform_4(%arg0: i32) -> (i32, i32) {
    %c0_i32 = arith.constant 0 : i32
    %c0_i32_0 = arith.constant 0 : i32
    %c0_i32_1 = arith.constant 0 : i32
    return %c0_i32, %c0_i32_0 : i32, i32
  }
  func.func @transform_5(%arg0: i32) -> (i32, i32) {
    %c0_i32 = arith.constant 0 : i32
    %c0_i32_0 = arith.constant 0 : i32
    %c0_i32_1 = arith.constant 0 : i32
    return %c0_i32, %c0_i32_0 : i32, i32
  }
  func.func @transform_6(%arg0: i32) -> (i32, i32) {
    %c0_i32 = arith.constant 0 : i32
    %c0_i32_0 = arith.constant 0 : i32
    %c0_i32_1 = arith.constant 0 : i32
    return %c0_i32, %c0_i32_0 : i32, i32
  }
  func.func @transform_7(%arg0: i32) -> (i32, i32) {
    %c0_i32 = arith.constant 0 : i32
    %c0_i32_0 = arith.constant 0 : i32
    %c0_i32_1 = arith.constant 0 : i32
    return %c0_i32, %c0_i32_0 : i32, i32
  }
  func.func @transform_8(%arg0: i32) -> (i32, i32) {
    %c0_i32 = arith.constant 0 : i32
    %c0_i32_0 = arith.constant 0 : i32
    %c0_i32_1 = arith.constant 0 : i32
    return %c0_i32, %c0_i32_0 : i32, i32
  }
  func.func @transform_9(%arg0: i32) -> (i32, i32) {
    %c0_i32 = arith.constant 0 : i32
    %c0_i32_0 = arith.constant 0 : i32
    %c0_i32_1 = arith.constant 0 : i32
    return %c0_i32, %c0_i32_0 : i32, i32
  }
  func.func @transform_10(%arg0: i32) -> (i32, i32) {
    %c0_i32 = arith.constant 0 : i32
    %c0_i32_0 = arith.constant 0 : i32
    %c0_i32_1 = arith.constant 0 : i32
    return %c0_i32, %c0_i32_0 : i32, i32
  }
  func.func @transform_11(%arg0: i32) -> (i32, i32) {
    %c0_i32 = arith.constant 0 : i32
    %c0_i32_0 = arith.constant 0 : i32
    %c0_i32_1 = arith.constant 0 : i32
    return %c0_i32, %c0_i32_0 : i32, i32
  }
  func.func @transform_12(%arg0: i32) -> (i32, i32, i32) {
    %c0_i32 = arith.constant 0 : i32
    %c0_i32_0 = arith.constant 0 : i32
    %c0_i32_1 = arith.constant 0 : i32
    return %arg0, %c0_i32, %c0_i32_0 : i32, i32, i32
  }
}

</mosaic_0001>

<llo_original>
// kernel: tpu_custom_call.1
$region0: #{tpu_custom_call.1}
  #allocation0 [shape = 'u32[]', space=smem, size = 0x4, offset = 0x4, fixed_abs, tag = 'smem constant byte address 0x4 - core index']
  #allocation1 [shape = 'u32[144,128]{1,0:T(1,128)}', space=vmem, size = 0x12000, scoped, tag = 'internal scratch']
  %s0 = inlined_call_operand.hbm [shape: f32[8,128], index: 0, kind: input, shape index: {}]
  %s1 = inlined_call_operand.hbm [shape: f32[8,128], index: 1, kind: output, shape index: {}]
  %s2 = sld [smem:[#allocation0]]
  $region41: #{tpu_custom_call.1} parent=0
    _
  %s4 = ssub.s32 1, %s2
  %s5 = scalar_select 0, %s4, %s2
  $region1: #{tpu_custom_call.1} parent=0
    #allocation2 [shape = 'u8[4096]{0}', space=vmem, size = 0x1000, scoped, tag = 'input window, operand 0, single buffered']
    #allocation3 [shape = 's32[2]{0}', space=sflag, size = 0x8, scoped, tag = 'scoped memory for tpu_custom_call.1']
    #allocation4 [shape = 's32[2]{0}', space=sflag, size = 0x8, scoped, tag = 'scoped memory for tpu_custom_call.1']
    #allocation5 [shape = 'u8[4096]{0}', space=vmem, size = 0x1000, scoped, tag = 'output window, operand 0, single buffered']
    %6 = vsyncpa [#allocation3], 0
    %7 = vsyncpa [#allocation4], 0
    loop: start=0, step=1, limit=4
    $region2: #{tpu_custom_call.1} parent=1 // loop_pre_header
      _
    $region3: #{tpu_custom_call.1} parent=1 // loop_header
      %s9 = sphi 0, %s13
      %p10 = scmp.ge.s32.totalorder %s9, 4
      %s17 = sphi 0, %s17
      %s19 = sphi 0, %s17
      %s20 = sphi 0, %s19
      %s34 = sphi 0, %s20
      %s38 = sphi 0, %s38
      %s40 = sphi 0, %s38
      %s41 = sphi 0, %s40
      %s55 = sphi 0, %s41
    $region4: #{tpu_custom_call.1} parent=1 // loop_header_branch
      %12 = sbr.rel (%p10) target = $region8
    $region5: #{tpu_custom_call.1} parent=1 // loop_body
      %s14 = ssub.s32 %s9, 1
      %s15 = ssub.s32 %s9, 2
      %s16 = sadd.s32 %s9, 1
      %s18 = sadd.s32 %s17, 1
      %p21 = scmp.eq.s32.totalorder %s9, 1
      %p22 = scmp.ne.s32.totalorder %s17, %s19
      %p23 = scmp.eq.s32.totalorder %s9, 0
      %p24 = por %p22, %p23
      %p25 = scmp.ne.s32.totalorder %s17, %s19
      %p26 = scmp.eq.s32.totalorder %s14, 1
      %p27 = por %p25, %p26
      %p28 = scmp.ne.s32.totalorder %s19, %s20
      %p29 = scmp.eq.s32.totalorder %s14, 0
      %p30 = por %p28, %p29
      %p31 = scmp.ne.s32.totalorder %s19, %s20
      %p32 = scmp.eq.s32.totalorder %s15, 1
      %p33 = por %p31, %p32
      %p35 = scmp.ne.s32.totalorder %s20, %s34
      %p36 = scmp.eq.s32.totalorder %s15, 0
      %p37 = por %p35, %p36
      %s39 = sadd.s32 %s38, 1
      %p42 = scmp.eq.s32.totalorder %s9, 1
      %p43 = scmp.ne.s32.totalorder %s38, %s40
      %p44 = scmp.eq.s32.totalorder %s9, 0
      %p45 = por %p43, %p44
      %p46 = scmp.ne.s32.totalorder %s38, %s40
      %p47 = scmp.eq.s32.totalorder %s14, 1
      %p48 = por %p46, %p47
      %p49 = scmp.ne.s32.totalorder %s40, %s41
      %p50 = scmp.eq.s32.totalorder %s14, 0
      %p51 = por %p49, %p50
      %p52 = scmp.ne.s32.totalorder %s40, %s41
      %p53 = scmp.eq.s32.totalorder %s15, 1
      %p54 = por %p52, %p53
      %p56 = scmp.ne.s32.totalorder %s41, %s55
      %p57 = scmp.eq.s32.totalorder %s15, 0
      %p58 = por %p56, %p57
      %p59 = scmp.le.s32.totalorder 1, %s9
      %p60 = scmp.lt.s32.totalorder %s9, 3
      %p61 = pnand %p59, %p60
      %p62 = pneg %p61
      // Predicated region
      $region9: #{tpu_custom_call.1} parent=5 // pred_check
        _
      $region10: #{tpu_custom_call.1} parent=5 // pred_check_branch
        %64 = sbr.rel (%p61) target = $region12
      $region11: #{tpu_custom_call.1} parent=5 // pred_region
        %s65 = ssub.s32 %s9, 1
        // Predicated region
        $region13: #{tpu_custom_call.1} parent=11 // pred_check
          %p66 = pneg %p30
        $region14: #{tpu_custom_call.1} parent=11 // pred_check_branch
          %68 = sbr.rel (%p66) target = $region16
        $region15: #{tpu_custom_call.1} parent=11 // pred_region
          %s70 = ssub.s32 128, 128
          %71 = vsyncadd [#allocation3], %s70
          %s73 = sshll.u32 [#allocation2], 4
          %s74 = int_to_ptr.vmem [resolvable:$true] %s73
          %76 = dma.hbm_to_vmem [thread:$0]  %s0, 128, %s74, [#allocation3]
        $region16: #{tpu_custom_call.1} parent=11 // pred_fallthru
          _
      $region12: #{tpu_custom_call.1} parent=5 // pred_fallthru
        _
      %p77 = scmp.lt.s32.totalorder %s9, 2
      // Predicated region
      $region17: #{tpu_custom_call.1} parent=5 // pred_check
        %p78 = pneg %p77
      $region18: #{tpu_custom_call.1} parent=5 // pred_check_branch
        %80 = sbr.rel (%p78) target = $region20
      $region19: #{tpu_custom_call.1} parent=5 // pred_region
        _
      $region20: #{tpu_custom_call.1} parent=5 // pred_fallthru
        _
      %p81 = scmp.le.s32.totalorder 1, %s9
      %p82 = scmp.lt.s32.totalorder %s9, 3
      %p83 = pnand %p81, %p82
      %p84 = pneg %p83
      // Predicated region
      $region21: #{tpu_custom_call.1} parent=5 // pred_check
        _
      $region22: #{tpu_custom_call.1} parent=5 // pred_check_branch
        %86 = sbr.rel (%p83) target = $region24
      $region23: #{tpu_custom_call.1} parent=5 // pred_region
        %s87 = ssub.s32 %s9, 1
        // Predicated region
        $region25: #{tpu_custom_call.1} parent=23 // pred_check
          %p88 = pneg %p30
        $region26: #{tpu_custom_call.1} parent=23 // pred_check_branch
          %90 = sbr.rel (%p88) target = $region28
        $region27: #{tpu_custom_call.1} parent=23 // pred_region
          %91 = dma.done [#allocation3], 128
        $region28: #{tpu_custom_call.1} parent=23 // pred_fallthru
          _
        %p92 = pneg %p30
        %p93 = pneg %p27
        %p94 = pneg %p51
        %p95 = pneg %p48
        %v96 = vld [vmem:[#allocation2] sm:$0xff]
        %97 = vst [vmem:[#allocation5] sm:$0xff] %v96
        // Predicated region
        $region29: #{tpu_custom_call.1} parent=23 // pred_check
          %p98 = pneg %p48
        $region30: #{tpu_custom_call.1} parent=23 // pred_check_branch
          %100 = sbr.rel (%p98) target = $region32
        $region31: #{tpu_custom_call.1} parent=23 // pred_region
          %s102 = ssub.s32 128, 128
          %103 = vsyncadd [#allocation4], %s102
          %s105 = sshll.u32 [#allocation5], 4
          %s106 = int_to_ptr.vmem [resolvable:$true] %s105
          %108 = dma.vmem_to_hbm [thread:$0]  %s106, 128, %s1, [#allocation4]
        $region32: #{tpu_custom_call.1} parent=23 // pred_fallthru
          _
        // Predicated region
        $region33: #{tpu_custom_call.1} parent=23 // pred_check
          %p109 = pneg %p48
        $region34: #{tpu_custom_call.1} parent=23 // pred_check_branch
          %111 = sbr.rel (%p109) target = $region36
        $region35: #{tpu_custom_call.1} parent=23 // pred_region
          %112 = dma.done [#allocation4], 128
        $region36: #{tpu_custom_call.1} parent=23 // pred_fallthru
          _
      $region24: #{tpu_custom_call.1} parent=5 // pred_fallthru
        _
      %p113 = scmp.le.s32.totalorder 2, %s9
      // Predicated region
      $region37: #{tpu_custom_call.1} parent=5 // pred_check
        %p114 = pneg %p113
      $region38: #{tpu_custom_call.1} parent=5 // pred_check_branch
        %116 = sbr.rel (%p114) target = $region40
      $region39: #{tpu_custom_call.1} parent=5 // pred_region
        %s117 = ssub.s32 %s9, 2
      $region40: #{tpu_custom_call.1} parent=5 // pred_fallthru
        _
    $region6: #{tpu_custom_call.1} parent=1 // loop_footer
      %s13 = sadd.s32 1, %s9
    $region7: #{tpu_custom_call.1} parent=1 // loop_footer_branch
      %8 = sbr.rel target = $region3
    $region8: #{tpu_custom_call.1} parent=1 // loop_exit
      _
    %118 = vsyncpa [#allocation3], 1
    %s119 = scalar_lea.sflag [#allocation3], 1
    %120 = vsyncpa %s119, 1
    %121 = vsyncpa [#allocation4], 1
    %s122 = scalar_lea.sflag [#allocation4], 1
    %123 = vsyncpa %s122, 1

// kernel: tpu_custom_call.1
$region0: #{tpu_custom_call.1}
  #allocation0 [shape = 'u32[]', space=smem, size = 0x4, offset = 0x4, fixed_abs, tag = 'smem constant byte address 0x4 - core index']
  #allocation1 [shape = 'u32[144,128]{1,0:T(1,128)}', space=vmem, size = 0x12000, scoped, tag = 'internal scratch']
  %s0 = inlined_call_operand.vmem [shape: f32[2,8,32], index: 0, kind: input, shape index: {}]
  %s1 = inlined_call_operand.vmem [shape: f32[2,6,32], index: 1, kind: input, shape index: {}]
  %s2 = inlined_call_operand.vmem [shape: f32[1,32], index: 2, kind: input, shape index: {}]
  %s3 = inlined_call_operand.vmem [shape: f32[1,32], index: 3, kind: input, shape index: {}]
  %s4 = inlined_call_operand.vmem [shape: f32[1,32], index: 4, kind: input, shape index: {}]
  %s5 = inlined_call_operand.vmem [shape: f32[1,32], index: 5, kind: input, shape index: {}]
  %s6 = inlined_call_operand.vmem [shape: f32[32,96], index: 6, kind: input, shape index: {}]
  %s7 = inlined_call_operand.vmem [shape: f32[1,96], index: 7, kind: input, shape index: {}]
  %s8 = inlined_call_operand.vmem [shape: f32[32,128], index: 8, kind: input, shape index: {}]
  %s9 = inlined_call_operand.vmem [shape: f32[1,128], index: 9, kind: input, shape index: {}]
  %s10 = inlined_call_operand.vmem [shape: f32[128,32], index: 10, kind: input, shape index: {}]
  %s11 = inlined_call_operand.vmem [shape: f32[1,32], index: 11, kind: input, shape index: {}]
  %s12 = inlined_call_operand.hbm [shape: f32[2,8,32], index: 12, kind: output, shape index: {}]
  %s13 = sld [smem:[#allocation0]]
  $region81: #{tpu_custom_call.1} parent=0
    _
  %s15 = ssub.s32 1, %s13
  %s16 = scalar_select 0, %s15, %s13
  $region1: #{tpu_custom_call.1} parent=0
    #allocation2 [shape = 'u8[8192]{0}', space=vmem, size = 0x2000, scoped, tag = 'output window, operand 0']
    #allocation3 [shape = 's32[2]{0}', space=sflag, size = 0x8, scoped, tag = 'scoped memory for tpu_custom_call.1']
    %17 = vsyncpa [#allocation3], 0
    %s18 = scalar_lea.sflag [#allocation3], 1
    %19 = vsyncpa %s18, 0
    loop: start=0, step=1, limit=4
    $region2: #{tpu_custom_call.1} parent=1 // loop_pre_header
      _
    $region3: #{tpu_custom_call.1} parent=1 // loop_header
      %s21 = sphi 0, %s25
      %p22 = scmp.ge.s32.totalorder %s21, 4
      %s31 = sphi 0, %s33
      %s34 = sphi 0, %s31
      %s35 = sphi 0, %s34
      %s51 = sphi 0, %s35
      %s57 = sphi 0, %s59
      %s60 = sphi 0, %s57
      %s61 = sphi 0, %s60
      %s77 = sphi 0, %s61
      %s81 = sphi 0, %s81
      %s83 = sphi 0, %s81
      %s84 = sphi 0, %s83
      %s98 = sphi 0, %s84
      %s102 = sphi 0, %s102
      %s104 = sphi 0, %s102
      %s105 = sphi 0, %s104
      %s119 = sphi 0, %s105
      %s123 = sphi 0, %s123
      %s125 = sphi 0, %s123
      %s126 = sphi 0, %s125
      %s140 = sphi 0, %s126
      %s144 = sphi 0, %s144
      %s146 = sphi 0, %s144
      %s147 = sphi 0, %s146
      %s161 = sphi 0, %s147
      %s165 = sphi 0, %s165
      %s167 = sphi 0, %s165
      %s168 = sphi 0, %s167
      %s182 = sphi 0, %s168
      %s186 = sphi 0, %s186
      %s188 = sphi 0, %s186
      %s189 = sphi 0, %s188
      %s203 = sphi 0, %s189
      %s207 = sphi 0, %s207
      %s209 = sphi 0, %s207
      %s210 = sphi 0, %s209
      %s224 = sphi 0, %s210
      %s228 = sphi 0, %s228
      %s230 = sphi 0, %s228
      %s231 = sphi 0, %s230
      %s245 = sphi 0, %s231
      %s249 = sphi 0, %s249
      %s251 = sphi 0, %s249
      %s252 = sphi 0, %s251
      %s266 = sphi 0, %s252
      %s270 = sphi 0, %s270
      %s272 = sphi 0, %s270
      %s273 = sphi 0, %s272
      %s287 = sphi 0, %s273
      %s293 = sphi 0, %s295
      %s296 = sphi 0, %s293
      %s297 = sphi 0, %s296
      %s313 = sphi 0, %s297
    $region4: #{tpu_custom_call.1} parent=1 // loop_header_branch
      %24 = sbr.rel (%p22) target = $region8
    $region5: #{tpu_custom_call.1} parent=1 // loop_body
      %s26 = ssub.s32 %s21, 1
      %s27 = ssub.s32 %s21, 2
      %s28 = sadd.s32 %s21, 1
      %s29 = ssub.s32 %s21, %s28
      %p30 = scmp.eq.s32.totalorder %s29, 0
      %s32 = sadd.s32 %s31, 1
      %s33 = scalar_select %p30, %s31, %s32
      %p36 = pneg %p30
      %p37 = scmp.eq.s32.totalorder %s21, 1
      %p38 = por %p36, %p37
      %p39 = scmp.ne.s32.totalorder %s31, %s34
      %p40 = scmp.eq.s32.totalorder %s21, 0
      %p41 = por %p39, %p40
      %p42 = scmp.ne.s32.totalorder %s31, %s34
      %p43 = scmp.eq.s32.totalorder %s26, 1
      %p44 = por %p42, %p43
      %p45 = scmp.ne.s32.totalorder %s34, %s35
      %p46 = scmp.eq.s32.totalorder %s26, 0
      %p47 = por %p45, %p46
      %p48 = scmp.ne.s32.totalorder %s34, %s35
      %p49 = scmp.eq.s32.totalorder %s27, 1
      %p50 = por %p48, %p49
      %p52 = scmp.ne.s32.totalorder %s35, %s51
      %p53 = scmp.eq.s32.totalorder %s27, 0
      %p54 = por %p52, %p53
      %s55 = ssub.s32 %s21, %s28
      %p56 = scmp.eq.s32.totalorder %s55, 0
      %s58 = sadd.s32 %s57, 1
      %s59 = scalar_select %p56, %s57, %s58
      %p62 = pneg %p56
      %p63 = scmp.eq.s32.totalorder %s21, 1
      %p64 = por %p62, %p63
      %p65 = scmp.ne.s32.totalorder %s57, %s60
      %p66 = scmp.eq.s32.totalorder %s21, 0
      %p67 = por %p65, %p66
      %p68 = scmp.ne.s32.totalorder %s57, %s60
      %p69 = scmp.eq.s32.totalorder %s26, 1
      %p70 = por %p68, %p69
      %p71 = scmp.ne.s32.totalorder %s60, %s61
      %p72 = scmp.eq.s32.totalorder %s26, 0
      %p73 = por %p71, %p72
      %p74 = scmp.ne.s32.totalorder %s60, %s61
      %p75 = scmp.eq.s32.totalorder %s27, 1
      %p76 = por %p74, %p75
      %p78 = scmp.ne.s32.totalorder %s61, %s77
      %p79 = scmp.eq.s32.totalorder %s27, 0
      %p80 = por %p78, %p79
      %s82 = sadd.s32 %s81, 1
      %p85 = scmp.eq.s32.totalorder %s21, 1
      %p86 = scmp.ne.s32.totalorder %s81, %s83
      %p87 = scmp.eq.s32.totalorder %s21, 0
      %p88 = por %p86, %p87
      %p89 = scmp.ne.s32.totalorder %s81, %s83
      %p90 = scmp.eq.s32.totalorder %s26, 1
      %p91 = por %p89, %p90
      %p92 = scmp.ne.s32.totalorder %s83, %s84
      %p93 = scmp.eq.s32.totalorder %s26, 0
      %p94 = por %p92, %p93
      %p95 = scmp.ne.s32.totalorder %s83, %s84
      %p96 = scmp.eq.s32.totalorder %s27, 1
      %p97 = por %p95, %p96
      %p99 = scmp.ne.s32.totalorder %s84, %s98
      %p100 = scmp.eq.s32.totalorder %s27, 0
      %p101 = por %p99, %p100
      %s103 = sadd.s32 %s102, 1
      %p106 = scmp.eq.s32.totalorder %s21, 1
      %p107 = scmp.ne.s32.totalorder %s102, %s104
      %p108 = scmp.eq.s32.totalorder %s21, 0
      %p109 = por %p107, %p108
      %p110 = scmp.ne.s32.totalorder %s102, %s104
      %p111 = scmp.eq.s32.totalorder %s26, 1
      %p112 = por %p110, %p111
      %p113 = scmp.ne.s32.totalorder %s104, %s105
      %p114 = scmp.eq.s32.totalorder %s26, 0
      %p115 = por %p113, %p114
      %p116 = scmp.ne.s32.totalorder %s104, %s105
      %p117 = scmp.eq.s32.totalorder %s27, 1
      %p118 = por %p116, %p117
      %p120 = scmp.ne.s32.totalorder %s105, %s119
      %p121 = scmp.eq.s32.totalorder %s27, 0
      %p122 = por %p120, %p121
      %s124 = sadd.s32 %s123, 1
      %p127 = scmp.eq.s32.totalorder %s21, 1
      %p128 = scmp.ne.s32.totalorder %s123, %s125
      %p129 = scmp.eq.s32.totalorder %s21, 0
      %p130 = por %p128, %p129
      %p131 = scmp.ne.s32.totalorder %s123, %s125
      %p132 = scmp.eq.s32.totalorder %s26, 1
      %p133 = por %p131, %p132
      %p134 = scmp.ne.s32.totalorder %s125, %s126
      %p135 = scmp.eq.s32.totalorder %s26, 0
      %p136 = por %p134, %p135
      %p137 = scmp.ne.s32.totalorder %s125, %s126
      %p138 = scmp.eq.s32.totalorder %s27, 1
      %p139 = por %p137, %p138
      %p141 = scmp.ne.s32.totalorder %s126, %s140
      %p142 = scmp.eq.s32.totalorder %s27, 0
      %p143 = por %p141, %p142
      %s145 = sadd.s32 %s144, 1
      %p148 = scmp.eq.s32.totalorder %s21, 1
      %p149 = scmp.ne.s32.totalorder %s144, %s146
      %p150 = scmp.eq.s32.totalorder %s21, 0
      %p151 = por %p149, %p150
      %p152 = scmp.ne.s32.totalorder %s144, %s146
      %p153 = scmp.eq.s32.totalorder %s26, 1
      %p154 = por %p152, %p153
      %p155 = scmp.ne.s32.totalorder %s146, %s147
      %p156 = scmp.eq.s32.totalorder %s26, 0
      %p157 = por %p155, %p156
      %p158 = scmp.ne.s32.totalorder %s146, %s147
      %p159 = scmp.eq.s32.totalorder %s27, 1
      %p160 = por %p158, %p159
      %p162 = scmp.ne.s32.totalorder %s147, %s161
      %p163 = scmp.eq.s32.totalorder %s27, 0
      %p164 = por %p162, %p163
      %s166 = sadd.s32 %s165, 1
      %p169 = scmp.eq.s32.totalorder %s21, 1
      %p170 = scmp.ne.s32.totalorder %s165, %s167
      %p171 = scmp.eq.s32.totalorder %s21, 0
      %p172 = por %p170, %p171
      %p173 = scmp.ne.s32.totalorder %s165, %s167
      %p174 = scmp.eq.s32.totalorder %s26, 1
      %p175 = por %p173, %p174
      %p176 = scmp.ne.s32.totalorder %s167, %s168
      %p177 = scmp.eq.s32.totalorder %s26, 0
      %p178 = por %p176, %p177
      %p179 = scmp.ne.s32.totalorder %s167, %s168
      %p180 = scmp.eq.s32.totalorder %s27, 1
      %p181 = por %p179, %p180
      %p183 = scmp.ne.s32.totalorder %s168, %s182
      %p184 = scmp.eq.s32.totalorder %s27, 0
      %p185 = por %p183, %p184
      %s187 = sadd.s32 %s186, 1
      %p190 = scmp.eq.s32.totalorder %s21, 1
      %p191 = scmp.ne.s32.totalorder %s186, %s188
      %p192 = scmp.eq.s32.totalorder %s21, 0
      %p193 = por %p191, %p192
      %p194 = scmp.ne.s32.totalorder %s186, %s188
      %p195 = scmp.eq.s32.totalorder %s26, 1
      %p196 = por %p194, %p195
      %p197 = scmp.ne.s32.totalorder %s188, %s189
      %p198 = scmp.eq.s32.totalorder %s26, 0
      %p199 = por %p197, %p198
      %p200 = scmp.ne.s32.totalorder %s188, %s189
      %p201 = scmp.eq.s32.totalorder %s27, 1
      %p202 = por %p200, %p201
      %p204 = scmp.ne.s32.totalorder %s189, %s203
      %p205 = scmp.eq.s32.totalorder %s27, 0
      %p206 = por %p204, %p205
      %s208 = sadd.s32 %s207, 1
      %p211 = scmp.eq.s32.totalorder %s21, 1
      %p212 = scmp.ne.s32.totalorder %s207, %s209
      %p213 = scmp.eq.s32.totalorder %s21, 0
      %p214 = por %p212, %p213
      %p215 = scmp.ne.s32.totalorder %s207, %s209
      %p216 = scmp.eq.s32.totalorder %s26, 1
      %p217 = por %p215, %p216
      %p218 = scmp.ne.s32.totalorder %s209, %s210
      %p219 = scmp.eq.s32.totalorder %s26, 0
      %p220 = por %p218, %p219
      %p221 = scmp.ne.s32.totalorder %s209, %s210
      %p222 = scmp.eq.s32.totalorder %s27, 1
      %p223 = por %p221, %p222
      %p225 = scmp.ne.s32.totalorder %s210, %s224
      %p226 = scmp.eq.s32.totalorder %s27, 0
      %p227 = por %p225, %p226
      %s229 = sadd.s32 %s228, 1
      %p232 = scmp.eq.s32.totalorder %s21, 1
      %p233 = scmp.ne.s32.totalorder %s228, %s230
      %p234 = scmp.eq.s32.totalorder %s21, 0
      %p235 = por %p233, %p234
      %p236 = scmp.ne.s32.totalorder %s228, %s230
      %p237 = scmp.eq.s32.totalorder %s26, 1
      %p238 = por %p236, %p237
      %p239 = scmp.ne.s32.totalorder %s230, %s231
      %p240 = scmp.eq.s32.totalorder %s26, 0
      %p241 = por %p239, %p240
      %p242 = scmp.ne.s32.totalorder %s230, %s231
      %p243 = scmp.eq.s32.totalorder %s27, 1
      %p244 = por %p242, %p243
      %p246 = scmp.ne.s32.totalorder %s231, %s245
      %p247 = scmp.eq.s32.totalorder %s27, 0
      %p248 = por %p246, %p247
      %s250 = sadd.s32 %s249, 1
      %p253 = scmp.eq.s32.totalorder %s21, 1
      %p254 = scmp.ne.s32.totalorder %s249, %s251
      %p255 = scmp.eq.s32.totalorder %s21, 0
      %p256 = por %p254, %p255
      %p257 = scmp.ne.s32.totalorder %s249, %s251
      %p258 = scmp.eq.s32.totalorder %s26, 1
      %p259 = por %p257, %p258
      %p260 = scmp.ne.s32.totalorder %s251, %s252
      %p261 = scmp.eq.s32.totalorder %s26, 0
      %p262 = por %p260, %p261
      %p263 = scmp.ne.s32.totalorder %s251, %s252
      %p264 = scmp.eq.s32.totalorder %s27, 1
      %p265 = por %p263, %p264
      %p267 = scmp.ne.s32.totalorder %s252, %s266
      %p268 = scmp.eq.s32.totalorder %s27, 0
      %p269 = por %p267, %p268
      %s271 = sadd.s32 %s270, 1
      %p274 = scmp.eq.s32.totalorder %s21, 1
      %p275 = scmp.ne.s32.totalorder %s270, %s272
      %p276 = scmp.eq.s32.totalorder %s21, 0
      %p277 = por %p275, %p276
      %p278 = scmp.ne.s32.totalorder %s270, %s272
      %p279 = scmp.eq.s32.totalorder %s26, 1
      %p280 = por %p278, %p279
      %p281 = scmp.ne.s32.totalorder %s272, %s273
      %p282 = scmp.eq.s32.totalorder %s26, 0
      %p283 = por %p281, %p282
      %p284 = scmp.ne.s32.totalorder %s272, %s273
      %p285 = scmp.eq.s32.totalorder %s27, 1
      %p286 = por %p284, %p285
      %p288 = scmp.ne.s32.totalorder %s273, %s287
      %p289 = scmp.eq.s32.totalorder %s27, 0
      %p290 = por %p288, %p289
      %s291 = ssub.s32 %s21, %s28
      %p292 = scmp.eq.s32.totalorder %s291, 0
      %s294 = sadd.s32 %s293, 1
      %s295 = scalar_select %p292, %s293, %s294
      %p298 = pneg %p292
      %p299 = scmp.eq.s32.totalorder %s21, 1
      %p300 = por %p298, %p299
      %p301 = scmp.ne.s32.totalorder %s293, %s296
      %p302 = scmp.eq.s32.totalorder %s21, 0
      %p303 = por %p301, %p302
      %p304 = scmp.ne.s32.totalorder %s293, %s296
      %p305 = scmp.eq.s32.totalorder %s26, 1
      %p306 = por %p304, %p305
      %p307 = scmp.ne.s32.totalorder %s296, %s297
      %p308 = scmp.eq.s32.totalorder %s26, 0
      %p309 = por %p307, %p308
      %p310 = scmp.ne.s32.totalorder %s296, %s297
      %p311 = scmp.eq.s32.totalorder %s27, 1
      %p312 = por %p310, %p311
      %p314 = scmp.ne.s32.totalorder %s297, %s313
      %p315 = scmp.eq.s32.totalorder %s27, 0
      %p316 = por %p314, %p315
      %p317 = scmp.le.s32.totalorder 1, %s21
      %p318 = scmp.lt.s32.totalorder %s21, 3
      %p319 = pnand %p317, %p318
      %p320 = pneg %p319
      // Predicated region
      $region9: #{tpu_custom_call.1} parent=5 // pred_check
        _
      $region10: #{tpu_custom_call.1} parent=5 // pred_check_branch
        %322 = sbr.rel (%p319) target = $region12
      $region11: #{tpu_custom_call.1} parent=5 // pred_region
        %s323 = ssub.s32 %s21, 1
        // Predicated region
        $region13: #{tpu_custom_call.1} parent=11 // pred_check
          %p324 = pneg %p94
        $region14: #{tpu_custom_call.1} parent=11 // pred_check_branch
          %326 = sbr.rel (%p324) target = $region16
        $region15: #{tpu_custom_call.1} parent=11 // pred_region
          _
        $region16: #{tpu_custom_call.1} parent=11 // pred_fallthru
          _
        // Predicated region
        $region17: #{tpu_custom_call.1} parent=11 // pred_check
          %p327 = pneg %p115
        $region18: #{tpu_custom_call.1} parent=11 // pred_check_branch
          %329 = sbr.rel (%p327) target = $region20
        $region19: #{tpu_custom_call.1} parent=11 // pred_region
          _
        $region20: #{tpu_custom_call.1} parent=11 // pred_fallthru
          _
        // Predicated region
        $region21: #{tpu_custom_call.1} parent=11 // pred_check
          %p330 = pneg %p136
        $region22: #{tpu_custom_call.1} parent=11 // pred_check_branch
          %332 = sbr.rel (%p330) target = $region24
        $region23: #{tpu_custom_call.1} parent=11 // pred_region
          _
        $region24: #{tpu_custom_call.1} parent=11 // pred_fallthru
          _
        // Predicated region
        $region25: #{tpu_custom_call.1} parent=11 // pred_check
          %p333 = pneg %p157
        $region26: #{tpu_custom_call.1} parent=11 // pred_check_branch
          %335 = sbr.rel (%p333) target = $region28
        $region27: #{tpu_custom_call.1} parent=11 // pred_region
          _
        $region28: #{tpu_custom_call.1} parent=11 // pred_fallthru
          _
        // Predicated region
        $region29: #{tpu_custom_call.1} parent=11 // pred_check
          %p336 = pneg %p178
        $region30: #{tpu_custom_call.1} parent=11 // pred_check_branch
          %338 = sbr.rel (%p336) target = $region32
        $region31: #{tpu_custom_call.1} parent=11 // pred_region
          _
        $region32: #{tpu_custom_call.1} parent=11 // pred_fallthru
          _
        // Predicated region
        $region33: #{tpu_custom_call.1} parent=11 // pred_check
          %p339 = pneg %p199
        $region34: #{tpu_custom_call.1} parent=11 // pred_check_branch
          %341 = sbr.rel (%p339) target = $region36
        $region35: #{tpu_custom_call.1} parent=11 // pred_region
          _
        $region36: #{tpu_custom_call.1} parent=11 // pred_fallthru
          _
        // Predicated region
        $region37: #{tpu_custom_call.1} parent=11 // pred_check
          %p342 = pneg %p220
        $region38: #{tpu_custom_call.1} parent=11 // pred_check_branch
          %344 = sbr.rel (%p342) target = $region40
        $region39: #{tpu_custom_call.1} parent=11 // pred_region
          _
        $region40: #{tpu_custom_call.1} parent=11 // pred_fallthru
          _
        // Predicated region
        $region41: #{tpu_custom_call.1} parent=11 // pred_check
          %p345 = pneg %p241
        $region42: #{tpu_custom_call.1} parent=11 // pred_check_branch
          %347 = sbr.rel (%p345) target = $region44
        $region43: #{tpu_custom_call.1} parent=11 // pred_region
          _
        $region44: #{tpu_custom_call.1} parent=11 // pred_fallthru
          _
        // Predicated region
        $region45: #{tpu_custom_call.1} parent=11 // pred_check
          %p348 = pneg %p262
        $region46: #{tpu_custom_call.1} parent=11 // pred_check_branch
          %350 = sbr.rel (%p348) target = $region48
        $region47: #{tpu_custom_call.1} parent=11 // pred_region
          _
        $region48: #{tpu_custom_call.1} parent=11 // pred_fallthru
          _
        // Predicated region
        $region49: #{tpu_custom_call.1} parent=11 // pred_check
          %p351 = pneg %p283
        $region50: #{tpu_custom_call.1} parent=11 // pred_check_branch
          %353 = sbr.rel (%p351) target = $region52
        $region51: #{tpu_custom_call.1} parent=11 // pred_region
          _
        $region52: #{tpu_custom_call.1} parent=11 // pred_fallthru
          _
      $region12: #{tpu_custom_call.1} parent=5 // pred_fallthru
        _
      %p354 = scmp.lt.s32.totalorder %s21, 2
      // Predicated region
      $region53: #{tpu_custom_call.1} parent=5 // pred_check
        %p355 = pneg %p354
      $region54: #{tpu_custom_call.1} parent=5 // pred_check_branch
        %357 = sbr.rel (%p355) target = $region56
      $region55: #{tpu_custom_call.1} parent=5 // pred_region
        // Predicated region
        $region57: #{tpu_custom_call.1} parent=55 // pred_check
          %p358 = pneg %p41
        $region58: #{tpu_custom_call.1} parent=55 // pred_check_branch
          %360 = sbr.rel (%p358) target = $region60
        $region59: #{tpu_custom_call.1} parent=55 // pred_region
          %p361 = scmp.lt.s32.totalorder %s21, 1
          %s362 = scalar_select %p361, %s21, 1
          %s363 = smul.addr %s362, 8
          %s364 = scalar_lea.vmem %s0, %s363
        $region60: #{tpu_custom_call.1} parent=55 // pred_fallthru
          _
        // Predicated region
        $region61: #{tpu_custom_call.1} parent=55 // pred_check
          %p365 = pneg %p67
        $region62: #{tpu_custom_call.1} parent=55 // pred_check_branch
          %367 = sbr.rel (%p365) target = $region64
        $region63: #{tpu_custom_call.1} parent=55 // pred_region
          %p368 = scmp.lt.s32.totalorder %s21, 1
          %s369 = scalar_select %p368, %s21, 1
          %s370 = smul.addr %s369, 8
          %s371 = scalar_lea.vmem %s1, %s370
        $region64: #{tpu_custom_call.1} parent=55 // pred_fallthru
          _
      $region56: #{tpu_custom_call.1} parent=5 // pred_fallthru
        _
      %p372 = scmp.le.s32.totalorder 1, %s21
      %p373 = scmp.lt.s32.totalorder %s21, 3
      %p374 = pnand %p372, %p373
      %p375 = pneg %p374
      // Predicated region
      $region65: #{tpu_custom_call.1} parent=5 // pred_check
        _
      $region66: #{tpu_custom_call.1} parent=5 // pred_check_branch
        %377 = sbr.rel (%p374) target = $region68
      $region67: #{tpu_custom_call.1} parent=5 // pred_region
        %s378 = ssub.s32 %s21, 1
        %p379 = scmp.lt.s32.totalorder %s26, 1
        %s380 = scalar_select %p379, %s26, 1
        %s381 = smul.addr %s380, 8
        %s382 = scalar_lea.vmem %s0, %s381
        %p383 = pneg %p47
        %p384 = pneg %p44
        %p385 = scmp.lt.s32.totalorder %s26, 1
        %s386 = scalar_select %p385, %s26, 1
        %s387 = smul.addr %s386, 8
        %s388 = scalar_lea.vmem %s1, %s387
        %p389 = pneg %p73
        %p390 = pneg %p70
        %p391 = pneg %p94
        %p392 = pneg %p91
        %p393 = pneg %p115
        %p394 = pneg %p112
        %p395 = pneg %p136
        %p396 = pneg %p133
        %p397 = pneg %p157
        %p398 = pneg %p154
        %p399 = pneg %p178
        %p400 = pneg %p175
        %p401 = pneg %p199
        %p402 = pneg %p196
        %p403 = pneg %p220
        %p404 = pneg %p217
        %p405 = pneg %p241
        %p406 = pneg %p238
        %p407 = pneg %p262
        %p408 = pneg %p259
        %p409 = pneg %p283
        %p410 = pneg %p280
        %p411 = pneg %p309
        %p412 = pneg %p306
        %s413 = sand.u32 %s296, 1
        %s414 = scalar_lea.sflag [#allocation3], %s413
        %s415 = sand.u32 %s296, 1
        %s416 = smul.addr %s415, 8
        %s417 = scalar_lea.vmem [#allocation2], %s416
        %p418 = scmp.lt.s32.totalorder %s26, 1
        %s419 = scalar_select %p418, %s26, 1
        %s420 = smul.addr %s419, 8
        %s421 = scalar_lea.vmem %s0, %s420
        %p422 = scmp.lt.s32.totalorder %s26, 1
        %s423 = scalar_select %p422, %s26, 1
        %s424 = smul.addr %s423, 8
        %s425 = scalar_lea.vmem %s1, %s424
        %v426 = vld [vmem:[%s421] sm:$0xff]
        %v427 = vld [vmem:[%s425] sm:$0x3f]
        %v428 = vld [vmem:[%s2] sm:$0x1]
        %v429 = vld [vmem:[%s3] sm:$0x1]
        %vm430 = vcmask 261120
        %v431 = vsel %vm430, %v426, 0.0
        %432 = vadd.xlane.f32.xlu0 %v431
        %v433 = vpop.xlane.xlu0 %432
        %v434 = vrcp.pop 32.0
        %v435 = vmul.f32 %v433, %v434
        %v436 = vsub.f32 %v426, %v435
        %v437 = vmul.f32 %v436, %v436
        %v438 = vsel %vm430, %v437, 0.0
        %439 = vadd.xlane.f32.xlu0 %v438
        %v440 = vpop.xlane.xlu0 %439
        %v441 = vmul.f32 %v440, %v434
        %v442 = vadd.f32 %v441, 1e-05
        %v443 = vrsqrt.pop %v442
        %v444 = vmul.f32 %v436, %v443
        %v446 = vlaneseq
        %v447 = vshrl.u32 %v446, 7
        %v448 = vsub.s32 0, %v447
        %v449 = vrot.slane %v428, %v448
        %v451 = vmul.f32 %v444, %v449
        %v453 = vlaneseq
        %v454 = vshrl.u32 %v453, 7
        %v455 = vsub.s32 0, %v454
        %v456 = vrot.slane %v429, %v455
        %v458 = vadd.f32 %v451, %v456
        %v459 = vadd.f32 %v427, 1.0
        %v460 = vlaneseq
        %v461 = vshrl.u32 %v460, 7
        %v462 = vsub.s32 1, %v461
        %v463 = vrot.slane %v459, %v462
        %v464 = vmul.f32 %v458, %v463
        %v465 = vlaneseq
        %v466 = vshrl.u32 %v465, 7
        %v467 = vsub.s32 2, %v466
        %v468 = vrot.slane %v427, %v467
        %v469 = vadd.f32 %v464, %v468
        %v470 = vld [vmem:[%s6] sm:$0xff]
        %v471 = vld [vmem:[%s6 + $0x8] sm:$0xff]
        %v472 = vld [vmem:[%s6 + $0x10] sm:$0xff]
        %v473 = vld [vmem:[%s6 + $0x18] sm:$0xff]
        %v474 = vld [vmem:[%s7] sm:$0x1]
        %v476 = vlaneseq
        %v477 = vshrl.u32 %v476, 7
        %v478 = vsub.s32 0, %v477
        %v479 = vrot.slane %v474, %v478
        %v482 = vsel %vm430, %v469, 0
        %484 = vmatprep.subr.mxu0 0.0
        %485 = vmatpush1.msra.mxu0 0.0
        %486 = vmatprep.subr.mxu0 0.0
        %487 = vmatpush1.msra.mxu0 0.0
        %488 = vmatprep.subr.mxu0 0.0
        %489 = vmatpush1.msra.mxu0 0.0
        %490 = vmatprep.subr.mxu0 0.0
        %491 = vmatpush1.msra.mxu0 0.0
        %492 = vmatprep.subr.mxu0 0.0
        %493 = vmatpush1.msra.mxu0 0.0
        %494 = vmatprep.subr.mxu0 0.0
        %495 = vmatpush1.msra.mxu0 0.0
        %496 = vmatprep.subr.mxu0 0.0
        %497 = vmatpush1.msra.mxu0 0.0
        %498 = vmatprep.subr.mxu0 0.0
        %499 = vmatpush1.msra.mxu0 0.0
        %500 = vmatprep.subr.mxu0 0.0
        %501 = vmatpush1.msra.mxu0 0.0
        %502 = vmatprep.subr.mxu0 0.0
        %503 = vmatpush1.msra.mxu0 0.0
        %504 = vmatprep.subr.mxu0 0.0
        %505 = vmatpush1.msra.mxu0 0.0
        %506 = vmatprep.subr.mxu0 0.0
        %507 = vmatpush1.msra.mxu0 0.0
        %508 = vmatprep.subr.mxu0 0.0
        %509 = vmatpush1.msra.mxu0 %v473
        %510 = vmatprep.subr.mxu0 0.0
        %511 = vmatpush1.msra.mxu0 %v472
        %512 = vmatprep.subr.mxu0 0.0
        %513 = vmatpush1.msra.mxu0 %v471
        %514 = vmatprep.subr.mxu0 0.0
        %515 = vmatpush1.msra.mxu0 %v470
        %516 = vmatprep.subr.mxu0 0.0
        %517 = vmatpush2.msra.mxu0 0.0
        %518 = vmatprep.subr.mxu0 0.0
        %519 = vmatpush2.msra.mxu0 0.0
        %520 = vmatprep.subr.mxu0 0.0
        %521 = vmatpush2.msra.mxu0 0.0
        %522 = vmatprep.subr.mxu0 0.0
        %523 = vmatpush2.msra.mxu0 0.0
        %524 = vmatprep.subr.mxu0 0.0
        %525 = vmatpush2.msra.mxu0 0.0
        %526 = vmatprep.subr.mxu0 0.0
        %527 = vmatpush2.msra.mxu0 0.0
        %528 = vmatprep.subr.mxu0 0.0
        %529 = vmatpush2.msra.mxu0 0.0
        %530 = vmatprep.subr.mxu0 0.0
        %531 = vmatpush2.msra.mxu0 0.0
        %532 = vmatprep.subr.mxu0 0.0
        %533 = vmatpush2.msra.mxu0 0.0
        %534 = vmatprep.subr.mxu0 0.0
        %535 = vmatpush2.msra.mxu0 0.0
        %536 = vmatprep.subr.mxu0 0.0
        %537 = vmatpush2.msra.mxu0 0.0
        %538 = vmatprep.subr.mxu0 0.0
        %539 = vmatpush2.msra.mxu0 0.0
        %540 = vmatprep.subr.mxu0 0.0
        %541 = vmatpush2.msra.mxu0 0.0
        %542 = vmatprep.subr.mxu0 0.0
        %543 = vmatpush2.msra.mxu0 0.0
        %544 = vmatprep.subr.mxu0 0.0
        %545 = vmatpush2.msra.mxu0 0.0
        %546 = vmatprep.subr.mxu0 0.0
        %547 = vmatpush2.msra.mxu0 0.0
        %548 = vmatprep.mubr.f32.mxu0 0.0
        %549 = vmatmul.mubr.f32.gmra.mxu0 %v482
        %v550 = vpop.f32.mrf.mxu0
        %v551 = vadd.f32 %v479, %v550
        %v552 = vpop.f32.mrf.mxu0
        %553 = vdwg.mxu0
        %v554 = vmul.f32 %v551, 0.17677669
        %556 = vrot.lane.b32.xlu0 %v551, 96
        %v557 = vpop.permute.xlu0 %556
        %v559 = vsel %vm430, %v554, 0
        %v561 = vsel %vm430, %v557, 0
        %563 = vmatprep.subr.mxu0 0.0
        %564 = vmatpush1.xpose.msra.mxu0 0.0
        %565 = vmatprep.subr.mxu0 0.0
        %566 = vmatpush1.xpose.msra.mxu0 0.0
        %567 = vmatprep.subr.mxu0 0.0
        %568 = vmatpush1.xpose.msra.mxu0 0.0
        %569 = vmatprep.subr.mxu0 0.0
        %570 = vmatpush1.xpose.msra.mxu0 0.0
        %571 = vmatprep.subr.mxu0 0.0
        %572 = vmatpush1.xpose.msra.mxu0 0.0
        %573 = vmatprep.subr.mxu0 0.0
        %574 = vmatpush1.xpose.msra.mxu0 0.0
        %575 = vmatprep.subr.mxu0 0.0
        %576 = vmatpush1.xpose.msra.mxu0 0.0
        %577 = vmatprep.subr.mxu0 0.0
        %578 = vmatpush1.xpose.msra.mxu0 0.0
        %579 = vmatprep.subr.mxu0 0.0
        %580 = vmatpush1.xpose.msra.mxu0 0.0
        %581 = vmatprep.subr.mxu0 0.0
        %582 = vmatpush1.xpose.msra.mxu0 0.0
        %583 = vmatprep.subr.mxu0 0.0
        %584 = vmatpush1.xpose.msra.mxu0 0.0
        %585 = vmatprep.subr.mxu0 0.0
        %586 = vmatpush1.xpose.msra.mxu0 0.0
        %587 = vmatprep.subr.mxu0 0.0
        %588 = vmatpush1.xpose.msra.mxu0 0.0
        %589 = vmatprep.subr.mxu0 0.0
        %590 = vmatpush1.xpose.msra.mxu0 0.0
        %591 = vmatprep.subr.mxu0 0.0
        %592 = vmatpush1.xpose.msra.mxu0 0.0
        %593 = vmatprep.subr.mxu0 0.0
        %594 = vmatpush1.xpose.msra.mxu0 %v561
        %595 = vmatprep.subr.mxu0 0.0
        %596 = vmatpush2.xpose.msra.mxu0 0.0
        %597 = vmatprep.subr.mxu0 0.0
        %598 = vmatpush2.xpose.msra.mxu0 0.0
        %599 = vmatprep.subr.mxu0 0.0
        %600 = vmatpush2.xpose.msra.mxu0 0.0
        %601 = vmatprep.subr.mxu0 0.0
        %602 = vmatpush2.xpose.msra.mxu0 0.0
        %603 = vmatprep.subr.mxu0 0.0
        %604 = vmatpush2.xpose.msra.mxu0 0.0
        %605 = vmatprep.subr.mxu0 0.0
        %606 = vmatpush2.xpose.msra.mxu0 0.0
        %607 = vmatprep.subr.mxu0 0.0
        %608 = vmatpush2.xpose.msra.mxu0 0.0
        %609 = vmatprep.subr.mxu0 0.0
        %610 = vmatpush2.xpose.msra.mxu0 0.0
        %611 = vmatprep.subr.mxu0 0.0
        %612 = vmatpush2.xpose.msra.mxu0 0.0
        %613 = vmatprep.subr.mxu0 0.0
        %614 = vmatpush2.xpose.msra.mxu0 0.0
        %615 = vmatprep.subr.mxu0 0.0
        %616 = vmatpush2.xpose.msra.mxu0 0.0
        %617 = vmatprep.subr.mxu0 0.0
        %618 = vmatpush2.xpose.msra.mxu0 0.0
        %619 = vmatprep.subr.mxu0 0.0
        %620 = vmatpush2.xpose.msra.mxu0 0.0
        %621 = vmatprep.subr.mxu0 0.0
        %622 = vmatpush2.xpose.msra.mxu0 0.0
        %623 = vmatprep.subr.mxu0 0.0
        %624 = vmatpush2.xpose.msra.mxu0 0.0
        %625 = vmatprep.subr.mxu0 0.0
        %626 = vmatpush2.xpose.msra.mxu0 0.0
        %627 = vmatprep.mubr.f32.mxu0 0.0
        %628 = vmatmul.mubr.f32.gmra.mxu0 %v559
        %v629 = vpop.f32.mrf.mxu0
        %v630 = vadd.f32 0.0, %v629
        %v631 = vpop.f32.mrf.mxu0
        %632 = vdwg.mxu0
        %vm633 = vcmask 64512
        %v634 = vsel %vm633, %v630, -inf
        %635 = vmax.xlane.f32.xlu0 %v634
        %v636 = vpop.xlane.xlu0 %635
        %v637 = vsub.f32 %v630, %v636
        %v638 = vmul.f32 %v637, 1.442695
        %v639 = vpow.pop %v638
        %v640 = vsel %vm633, %v639, 0.0
        %641 = vadd.xlane.f32.xlu0 %v640
        %v642 = vpop.xlane.xlu0 %641
        %643 = vrot.lane.b32.xlu0 %v551, 64
        %v644 = vpop.permute.xlu0 %643
        %v647 = vsel %vm633, %v639, 0
        %649 = vmatprep.subr.mxu0 0.0
        %650 = vmatpush1.msra.mxu0 0.0
        %651 = vmatprep.subr.mxu0 0.0
        %652 = vmatpush1.msra.mxu0 0.0
        %653 = vmatprep.subr.mxu0 0.0
        %654 = vmatpush1.msra.mxu0 0.0
        %655 = vmatprep.subr.mxu0 0.0
        %656 = vmatpush1.msra.mxu0 0.0
        %657 = vmatprep.subr.mxu0 0.0
        %658 = vmatpush1.msra.mxu0 0.0
        %659 = vmatprep.subr.mxu0 0.0
        %660 = vmatpush1.msra.mxu0 0.0
        %661 = vmatprep.subr.mxu0 0.0
        %662 = vmatpush1.msra.mxu0 0.0
        %663 = vmatprep.subr.mxu0 0.0
        %664 = vmatpush1.msra.mxu0 0.0
        %665 = vmatprep.subr.mxu0 0.0
        %666 = vmatpush1.msra.mxu0 0.0
        %667 = vmatprep.subr.mxu0 0.0
        %668 = vmatpush1.msra.mxu0 0.0
        %669 = vmatprep.subr.mxu0 0.0
        %670 = vmatpush1.msra.mxu0 0.0
        %671 = vmatprep.subr.mxu0 0.0
        %672 = vmatpush1.msra.mxu0 0.0
        %673 = vmatprep.subr.mxu0 0.0
        %674 = vmatpush1.msra.mxu0 0.0
        %675 = vmatprep.subr.mxu0 0.0
        %676 = vmatpush1.msra.mxu0 0.0
        %677 = vmatprep.subr.mxu0 0.0
        %678 = vmatpush1.msra.mxu0 0.0
        %679 = vmatprep.subr.mxu0 0.0
        %680 = vmatpush1.msra.mxu0 %v644
        %681 = vmatprep.subr.mxu0 0.0
        %682 = vmatpush2.msra.mxu0 0.0
        %683 = vmatprep.subr.mxu0 0.0
        %684 = vmatpush2.msra.mxu0 0.0
        %685 = vmatprep.subr.mxu0 0.0
        %686 = vmatpush2.msra.mxu0 0.0
        %687 = vmatprep.subr.mxu0 0.0
        %688 = vmatpush2.msra.mxu0 0.0
        %689 = vmatprep.subr.mxu0 0.0
        %690 = vmatpush2.msra.mxu0 0.0
        %691 = vmatprep.subr.mxu0 0.0
        %692 = vmatpush2.msra.mxu0 0.0
        %693 = vmatprep.subr.mxu0 0.0
        %694 = vmatpush2.msra.mxu0 0.0
        %695 = vmatprep.subr.mxu0 0.0
        %696 = vmatpush2.msra.mxu0 0.0
        %697 = vmatprep.subr.mxu0 0.0
        %698 = vmatpush2.msra.mxu0 0.0
        %699 = vmatprep.subr.mxu0 0.0
        %700 = vmatpush2.msra.mxu0 0.0
        %701 = vmatprep.subr.mxu0 0.0
        %702 = vmatpush2.msra.mxu0 0.0
        %703 = vmatprep.subr.mxu0 0.0
        %704 = vmatpush2.msra.mxu0 0.0
        %705 = vmatprep.subr.mxu0 0.0
        %706 = vmatpush2.msra.mxu0 0.0
        %707 = vmatprep.subr.mxu0 0.0
        %708 = vmatpush2.msra.mxu0 0.0
        %709 = vmatprep.subr.mxu0 0.0
        %710 = vmatpush2.msra.mxu0 0.0
        %711 = vmatprep.subr.mxu0 0.0
        %712 = vmatpush2.msra.mxu0 0.0
        %713 = vmatprep.mubr.f32.mxu0 0.0
        %714 = vmatmul.mubr.f32.gmra.mxu0 %v647
        %v715 = vpop.f32.mrf.mxu0
        %v716 = vadd.f32 0.0, %v715
        %v717 = vpop.f32.mrf.mxu0
        %718 = vdwg.mxu0
        %v719 = vrcp.pop %v642
        %v720 = vmul.f32 %v716, %v719
        %v721 = vlaneseq
        %v722 = vshrl.u32 %v721, 7
        %v723 = vsub.s32 0, %v722
        %v724 = vrot.slane %v427, %v723
        %v725 = vmul.f32 %v724, %v720
        %v726 = vadd.f32 %v426, %v725
        %v727 = vld [vmem:[%s4] sm:$0x1]
        %v728 = vld [vmem:[%s5] sm:$0x1]
        %v729 = vsel %vm430, %v726, 0.0
        %730 = vadd.xlane.f32.xlu0 %v729
        %v731 = vpop.xlane.xlu0 %730
        %v732 = vmul.f32 %v731, %v434
        %v733 = vsub.f32 %v726, %v732
        %v734 = vmul.f32 %v733, %v733
        %v735 = vsel %vm430, %v734, 0.0
        %736 = vadd.xlane.f32.xlu0 %v735
        %v737 = vpop.xlane.xlu0 %736
        %v738 = vmul.f32 %v737, %v434
        %v739 = vadd.f32 %v738, 1e-05
        %v740 = vrsqrt.pop %v739
        %v741 = vmul.f32 %v733, %v740
        %v743 = vlaneseq
        %v744 = vshrl.u32 %v743, 7
        %v745 = vsub.s32 0, %v744
        %v746 = vrot.slane %v727, %v745
        %v748 = vmul.f32 %v741, %v746
        %v750 = vlaneseq
        %v751 = vshrl.u32 %v750, 7
        %v752 = vsub.s32 0, %v751
        %v753 = vrot.slane %v728, %v752
        %v755 = vadd.f32 %v748, %v753
        %v756 = vlaneseq
        %v757 = vshrl.u32 %v756, 7
        %v758 = vsub.s32 4, %v757
        %v759 = vrot.slane %v459, %v758
        %v760 = vmul.f32 %v755, %v759
        %v761 = vlaneseq
        %v762 = vshrl.u32 %v761, 7
        %v763 = vsub.s32 5, %v762
        %v764 = vrot.slane %v427, %v763
        %v765 = vadd.f32 %v760, %v764
        %v766 = vld [vmem:[%s8] sm:$0xff]
        %v767 = vld [vmem:[%s8 + $0x8] sm:$0xff]
        %v768 = vld [vmem:[%s8 + $0x10] sm:$0xff]
        %v769 = vld [vmem:[%s8 + $0x18] sm:$0xff]
        %v770 = vld [vmem:[%s9] sm:$0x1]
        %v772 = vlaneseq
        %v773 = vshrl.u32 %v772, 7
        %v774 = vsub.s32 0, %v773
        %v775 = vrot.slane %v770, %v774
        %v778 = vsel %vm430, %v765, 0
        %780 = vmatprep.subr.mxu0 0.0
        %781 = vmatpush1.msra.mxu0 0.0
        %782 = vmatprep.subr.mxu0 0.0
        %783 = vmatpush1.msra.mxu0 0.0
        %784 = vmatprep.subr.mxu0 0.0
        %785 = vmatpush1.msra.mxu0 0.0
        %786 = vmatprep.subr.mxu0 0.0
        %787 = vmatpush1.msra.mxu0 0.0
        %788 = vmatprep.subr.mxu0 0.0
        %789 = vmatpush1.msra.mxu0 0.0
        %790 = vmatprep.subr.mxu0 0.0
        %791 = vmatpush1.msra.mxu0 0.0
        %792 = vmatprep.subr.mxu0 0.0
        %793 = vmatpush1.msra.mxu0 0.0
        %794 = vmatprep.subr.mxu0 0.0
        %795 = vmatpush1.msra.mxu0 0.0
        %796 = vmatprep.subr.mxu0 0.0
        %797 = vmatpush1.msra.mxu0 0.0
        %798 = vmatprep.subr.mxu0 0.0
        %799 = vmatpush1.msra.mxu0 0.0
        %800 = vmatprep.subr.mxu0 0.0
        %801 = vmatpush1.msra.mxu0 0.0
        %802 = vmatprep.subr.mxu0 0.0
        %803 = vmatpush1.msra.mxu0 0.0
        %804 = vmatprep.subr.mxu0 0.0
        %805 = vmatpush1.msra.mxu0 %v769
        %806 = vmatprep.subr.mxu0 0.0
        %807 = vmatpush1.msra.mxu0 %v768
        %808 = vmatprep.subr.mxu0 0.0
        %809 = vmatpush1.msra.mxu0 %v767
        %810 = vmatprep.subr.mxu0 0.0
        %811 = vmatpush1.msra.mxu0 %v766
        %812 = vmatprep.subr.mxu0 0.0
        %813 = vmatpush2.msra.mxu0 0.0
        %814 = vmatprep.subr.mxu0 0.0
        %815 = vmatpush2.msra.mxu0 0.0
        %816 = vmatprep.subr.mxu0 0.0
        %817 = vmatpush2.msra.mxu0 0.0
        %818 = vmatprep.subr.mxu0 0.0
        %819 = vmatpush2.msra.mxu0 0.0
        %820 = vmatprep.subr.mxu0 0.0
        %821 = vmatpush2.msra.mxu0 0.0
        %822 = vmatprep.subr.mxu0 0.0
        %823 = vmatpush2.msra.mxu0 0.0
        %824 = vmatprep.subr.mxu0 0.0
        %825 = vmatpush2.msra.mxu0 0.0
        %826 = vmatprep.subr.mxu0 0.0
        %827 = vmatpush2.msra.mxu0 0.0
        %828 = vmatprep.subr.mxu0 0.0
        %829 = vmatpush2.msra.mxu0 0.0
        %830 = vmatprep.subr.mxu0 0.0
        %831 = vmatpush2.msra.mxu0 0.0
        %832 = vmatprep.subr.mxu0 0.0
        %833 = vmatpush2.msra.mxu0 0.0
        %834 = vmatprep.subr.mxu0 0.0
        %835 = vmatpush2.msra.mxu0 0.0
        %836 = vmatprep.subr.mxu0 0.0
        %837 = vmatpush2.msra.mxu0 0.0
        %838 = vmatprep.subr.mxu0 0.0
        %839 = vmatpush2.msra.mxu0 0.0
        %840 = vmatprep.subr.mxu0 0.0
        %841 = vmatpush2.msra.mxu0 0.0
        %842 = vmatprep.subr.mxu0 0.0
        %843 = vmatpush2.msra.mxu0 0.0
        %844 = vmatprep.mubr.f32.mxu0 0.0
        %845 = vmatmul.mubr.f32.gmra.mxu0 %v778
        %v846 = vpop.f32.mrf.mxu0
        %v847 = vadd.f32 %v775, %v846
        %v848 = vpop.f32.mrf.mxu0
        %849 = vdwg.mxu0
        %v850 = vmul.f32 %v847, 0.5
        %v851 = vmul.f32 %v847, 0.70710677
        %v852 = verf.f32.pop %v851
        %v853 = vadd.f32 %v852, 1.0
        %v854 = vmul.f32 %v850, %v853
        %v855 = vld [vmem:[%s10] sm:$0xff]
        %v856 = vld [vmem:[%s10 + $0x8] sm:$0xff]
        %v857 = vld [vmem:[%s10 + $0x10] sm:$0xff]
        %v858 = vld [vmem:[%s10 + $0x18] sm:$0xff]
        %v859 = vld [vmem:[%s10 + $0x20] sm:$0xff]
        %v860 = vld [vmem:[%s10 + $0x28] sm:$0xff]
        %v861 = vld [vmem:[%s10 + $0x30] sm:$0xff]
        %v862 = vld [vmem:[%s10 + $0x38] sm:$0xff]
        %v863 = vld [vmem:[%s10 + $0x40] sm:$0xff]
        %v864 = vld [vmem:[%s10 + $0x48] sm:$0xff]
        %v865 = vld [vmem:[%s10 + $0x50] sm:$0xff]
        %v866 = vld [vmem:[%s10 + $0x58] sm:$0xff]
        %v867 = vld [vmem:[%s10 + $0x60] sm:$0xff]
        %v868 = vld [vmem:[%s10 + $0x68] sm:$0xff]
        %v869 = vld [vmem:[%s10 + $0x70] sm:$0xff]
        %v870 = vld [vmem:[%s10 + $0x78] sm:$0xff]
        %v871 = vld [vmem:[%s11] sm:$0x1]
        %v873 = vlaneseq
        %v874 = vshrl.u32 %v873, 7
        %v875 = vsub.s32 0, %v874
        %v876 = vrot.slane %v871, %v875
        %878 = vmatprep.subr.mxu0 0.0
        %879 = vmatpush1.msra.mxu0 %v870
        %880 = vmatprep.subr.mxu0 0.0
        %881 = vmatpush1.msra.mxu0 %v869
        %882 = vmatprep.subr.mxu0 0.0
        %883 = vmatpush1.msra.mxu0 %v868
        %884 = vmatprep.subr.mxu0 0.0
        %885 = vmatpush1.msra.mxu0 %v867
        %886 = vmatprep.subr.mxu0 0.0
        %887 = vmatpush1.msra.mxu0 %v866
        %888 = vmatprep.subr.mxu0 0.0
        %889 = vmatpush1.msra.mxu0 %v865
        %890 = vmatprep.subr.mxu0 0.0
        %891 = vmatpush1.msra.mxu0 %v864
        %892 = vmatprep.subr.mxu0 0.0
        %893 = vmatpush1.msra.mxu0 %v863
        %894 = vmatprep.subr.mxu0 0.0
        %895 = vmatpush1.msra.mxu0 %v862
        %896 = vmatprep.subr.mxu0 0.0
        %897 = vmatpush1.msra.mxu0 %v861
        %898 = vmatprep.subr.mxu0 0.0
        %899 = vmatpush1.msra.mxu0 %v860
        %900 = vmatprep.subr.mxu0 0.0
        %901 = vmatpush1.msra.mxu0 %v859
        %902 = vmatprep.subr.mxu0 0.0
        %903 = vmatpush1.msra.mxu0 %v858
        %904 = vmatprep.subr.mxu0 0.0
        %905 = vmatpush1.msra.mxu0 %v857
        %906 = vmatprep.subr.mxu0 0.0
        %907 = vmatpush1.msra.mxu0 %v856
        %908 = vmatprep.subr.mxu0 0.0
        %909 = vmatpush1.msra.mxu0 %v855
        %910 = vmatprep.subr.mxu0 0.0
        %911 = vmatpush2.msra.mxu0 0.0
        %912 = vmatprep.subr.mxu0 0.0
        %913 = vmatpush2.msra.mxu0 0.0
        %914 = vmatprep.subr.mxu0 0.0
        %915 = vmatpush2.msra.mxu0 0.0
        %916 = vmatprep.subr.mxu0 0.0
        %917 = vmatpush2.msra.mxu0 0.0
        %918 = vmatprep.subr.mxu0 0.0
        %919 = vmatpush2.msra.mxu0 0.0
        %920 = vmatprep.subr.mxu0 0.0
        %921 = vmatpush2.msra.mxu0 0.0
        %922 = vmatprep.subr.mxu0 0.0
        %923 = vmatpush2.msra.mxu0 0.0
        %924 = vmatprep.subr.mxu0 0.0
        %925 = vmatpush2.msra.mxu0 0.0
        %926 = vmatprep.subr.mxu0 0.0
        %927 = vmatpush2.msra.mxu0 0.0
        %928 = vmatprep.subr.mxu0 0.0
        %929 = vmatpush2.msra.mxu0 0.0
        %930 = vmatprep.subr.mxu0 0.0
        %931 = vmatpush2.msra.mxu0 0.0
        %932 = vmatprep.subr.mxu0 0.0
        %933 = vmatpush2.msra.mxu0 0.0
        %934 = vmatprep.subr.mxu0 0.0
        %935 = vmatpush2.msra.mxu0 0.0
        %936 = vmatprep.subr.mxu0 0.0
        %937 = vmatpush2.msra.mxu0 0.0
        %938 = vmatprep.subr.mxu0 0.0
        %939 = vmatpush2.msra.mxu0 0.0
        %940 = vmatprep.subr.mxu0 0.0
        %941 = vmatpush2.msra.mxu0 0.0
        %942 = vmatprep.mubr.f32.mxu0 0.0
        %943 = vmatmul.mubr.f32.gmra.mxu0 %v854
        %v944 = vpop.f32.mrf.mxu0
        %v945 = vadd.f32 %v876, %v944
        %v946 = vpop.f32.mrf.mxu0
        %947 = vdwg.mxu0
        %v948 = vmul.f32 %v945, 0.5
        %v949 = vmul.f32 %v945, 0.70710677
        %v950 = verf.f32.pop %v949
        %v951 = vadd.f32 %v950, 1.0
        %v952 = vmul.f32 %v948, %v951
        %v953 = vlaneseq
        %v954 = vshrl.u32 %v953, 7
        %v955 = vsub.s32 3, %v954
        %v956 = vrot.slane %v427, %v955
        %v957 = vmul.f32 %v956, %v952
        %v958 = vadd.f32 %v726, %v957
        %959 = vst.msk [vmem:[%s417] sm:$0xff] %vm430, %v958
        %s960 = sand.u32 %s296, 1
        %s961 = scalar_lea.sflag [#allocation3], %s960
        %s962 = sand.u32 %s296, 1
        %s963 = smul.addr %s962, 8
        %s964 = scalar_lea.vmem [#allocation2], %s963
        // Predicated region
        $region69: #{tpu_custom_call.1} parent=67 // pred_check
          %p965 = pneg %p306
        $region70: #{tpu_custom_call.1} parent=67 // pred_check_branch
          %967 = sbr.rel (%p965) target = $region72
        $region71: #{tpu_custom_call.1} parent=67 // pred_region
          %s969 = ssub.s32 128, 128
          %970 = vsyncadd %s961, %s969
          %s971 = smul.addr %s26, 128
          %s972 = scalar_lea.hbm %s12, %s971
          %s974 = sshll.u32 %s964, 4
          %s975 = int_to_ptr.vmem [resolvable:$true] %s974
          %977 = dma.vmem_to_hbm [thread:$0]  %s975, 128, %s972, %s961
        $region72: #{tpu_custom_call.1} parent=67 // pred_fallthru
          _
      $region68: #{tpu_custom_call.1} parent=5 // pred_fallthru
        _
      %p978 = scmp.le.s32.totalorder 2, %s21
      // Predicated region
      $region73: #{tpu_custom_call.1} parent=5 // pred_check
        %p979 = pneg %p978
      $region74: #{tpu_custom_call.1} parent=5 // pred_check_branch
        %981 = sbr.rel (%p979) target = $region76
      $region75: #{tpu_custom_call.1} parent=5 // pred_region
        %s982 = ssub.s32 %s21, 2
        // Predicated region
        $region77: #{tpu_custom_call.1} parent=75 // pred_check
          %p983 = pneg %p312
        $region78: #{tpu_custom_call.1} parent=75 // pred_check_branch
          %985 = sbr.rel (%p983) target = $region80
        $region79: #{tpu_custom_call.1} parent=75 // pred_region
          %s986 = sand.u32 %s297, 1
          %s987 = scalar_lea.sflag [#allocation3], %s986
          %s988 = sand.u32 %s297, 1
          %s989 = smul.addr %s988, 8
          %s990 = scalar_lea.vmem [#allocation2], %s989
          %991 = dma.done %s987, 128
        $region80: #{tpu_custom_call.1} parent=75 // pred_fallthru
          _
      $region76: #{tpu_custom_call.1} parent=5 // pred_fallthru
        _
    $region6: #{tpu_custom_call.1} parent=1 // loop_footer
      %s25 = sadd.s32 1, %s21
    $region7: #{tpu_custom_call.1} parent=1 // loop_footer_branch
      %20 = sbr.rel target = $region3
    $region8: #{tpu_custom_call.1} parent=1 // loop_exit
      _
    %992 = vsyncpa [#allocation3], 1
    %s993 = scalar_lea.sflag [#allocation3], 1
    %994 = vsyncpa %s993, 1

</llo_original>
